<compile_context>
chip_gen: v7x
topology: tpu7x:2x2x1
jax: 0.10.0
libtpu: 0.0.40
codegen_flags: <defaults>
</compile_context>

<pallas_src>
import jax
import jax.numpy as jnp
from jax import lax
from jax.experimental import pallas as pl
from jax.experimental.pallas import tpu as pltpu


def _interation_kernel(n1_ref, n2_ref, n3_ref,
                       wq_ref, bq_ref,
                       wk_ref, bk_ref,
                       wv_ref, bv_ref,
                       wc_ref, bc_ref,
                       gamma_ref,
                       out_ref):
    # Whole arrays are resident in VMEM (single invocation, no grid).
    wq = wq_ref[...]   # (C4, C)   BN scale already folded into the weights
    bq = bq_ref[...]   # (C4, 1)
    wk = wk_ref[...]
    bk = bk_ref[...]
    wv = wv_ref[...]   # (C, C)
    bv = bv_ref[...]   # (C, 1)
    wc = wc_ref[...]
    bc = bc_ref[...]
    gamma = gamma_ref[0]          # scalar, from SMEM

    B = n1_ref.shape[0]

    # B is tiny -> static unroll.  All work stays channels-first (C, H);
    # transposed contractions are expressed via dot_general dimension_numbers
    # so no transpose/relayout is ever materialized.
    for b in range(B):
        x1 = n1_ref[b]            # (C, H)
        x2 = n2_ref[b]
        x3 = n3_ref[b]

        # 1x1 conv + folded-BN shift + ReLU
        q = jnp.maximum(
            lax.dot_general(wq, x1, (((1,), (0,)), ((), ())),
                            preferred_element_type=jnp.float32) + bq, 0.0)   # (C4, H)
        k = jnp.maximum(
            lax.dot_general(wk, x2, (((1,), (0,)), ((), ())),
                            preferred_element_type=jnp.float32) + bk, 0.0)   # (C4, H)
        v = jnp.maximum(
            lax.dot_general(wv, x3, (((1,), (0,)), ((), ())),
                            preferred_element_type=jnp.float32) + bv, 0.0)   # (C, H)

        # scores[i, j] = sum_c q[c, i] * k[c, j]   (q^T k, trans-LHS contraction)
        scores = lax.dot_general(q, k, (((0,), (0,)), ((), ())),
                                 preferred_element_type=jnp.float32)         # (H, H)

        # softmax over the last axis (dim=2 in the PyTorch code)
        m = jnp.max(scores, axis=-1, keepdims=True)
        e = jnp.exp(scores - m)
        att = e * pl.reciprocal(jnp.sum(e, axis=-1, keepdims=True), approx=True)

        # out[c, i] = sum_j v[c, j] * att[i, j]    (v att^T, trans-RHS contraction)
        o = lax.dot_general(v, att, (((1,), (1,)), ((), ())),
                            preferred_element_type=jnp.float32)              # (C, H)

        # final 1x1 conv + folded-BN shift + ReLU
        y = jnp.maximum(
            lax.dot_general(wc, o, (((1,), (0,)), ((), ())),
                            preferred_element_type=jnp.float32) + bc, 0.0)   # (C, H)

        # residual; gamma stays a post-ReLU multiply (valid for any sign)
        out_ref[b] = x3 + gamma * y


def interation_forward(n1_nchw, n2_nchw, n3_nchw, params):
    """Inputs are PyTorch-style NCHW (B, C, H, 1); output is (B, C, H, 1)."""
    # Only a degenerate-dim squeeze (layout-preserving) -- no transposes.
    n1 = jnp.squeeze(n1_nchw, -1).astype(jnp.float32)   # (B, C, H)
    n2 = jnp.squeeze(n2_nchw, -1).astype(jnp.float32)
    n3 = jnp.squeeze(n3_nchw, -1).astype(jnp.float32)
    B, C, H = n1.shape

    vmem = pl.BlockSpec(memory_space=pltpu.MemorySpace.VMEM)
    smem = pl.BlockSpec(memory_space=pltpu.MemorySpace.SMEM)

    out_bch = pl.pallas_call(
        _interation_kernel,
        out_shape=jax.ShapeDtypeStruct((B, C, H), jnp.float32),
        # Single invocation (no grid): whole arrays in VMEM, gamma in SMEM.
        in_specs=[vmem, vmem, vmem,          # n1, n2, n3
                  vmem, vmem,                # wq, bq
                  vmem, vmem,                # wk, bk
                  vmem, vmem,                # wv, bv
                  vmem, vmem,                # wc, bc
                  smem],                     # gamma
        out_specs=vmem,
    )(n1, n2, n3,
      params["wq"], params["bq"],
      params["wk"], params["bk"],
      params["wv"], params["bv"],
      params["wc"], params["bc"],
      params["gamma"])

    # restore the trailing unit W dim (degenerate-dim reshape, no relayout)
    return out_bch[..., None]


def _fold_conv_bn(key, c_in, c_out, eps=1e-5):
    """Deterministically init Conv2d(1x1)+BatchNorm2d(eval) and fold BN.

    The BN scale is folded directly into the conv weight (exact), so the
    kernel only needs a weight (c_out, c_in) and a shift (c_out, 1).
    """
    k1, k2, k3, k4, k5, k6 = jax.random.split(key, 6)
    w = 0.1 * jax.random.normal(k1, (c_out, c_in), jnp.float32)   # conv weight
    b = 0.1 * jax.random.normal(k2, (c_out,), jnp.float32)        # conv bias
    bn_w = 1.0 + 0.1 * jax.random.normal(k3, (c_out,), jnp.float32)
    bn_b = 0.1 * jax.random.normal(k4, (c_out,), jnp.float32)
    r_mean = 0.1 * jax.random.normal(k5, (c_out,), jnp.float32)
    r_var = 1.0 + 0.1 * jax.random.uniform(k6, (c_out,), jnp.float32)
    scale = bn_w / jnp.sqrt(r_var + eps)
    w_folded = w * scale[:, None]                               # (c_out, c_in)
    shift = ((b - r_mean) * scale + bn_b)[:, None]              # (c_out, 1)
    return w_folded, shift


def _reference(n1_nchw, n2_nchw, n3_nchw, p):
    """Pure-JAX reference (exact f32 contractions), channels-first layout."""
    n1 = jnp.squeeze(n1_nchw, -1).astype(jnp.float32)
    n2 = jnp.squeeze(n2_nchw, -1).astype(jnp.float32)
    n3 = jnp.squeeze(n3_nchw, -1).astype(jnp.float32)

    def block(x, w, b):
        z = jnp.einsum("oc,bch->boh", w, x, precision="highest") + b[None]
        return jnp.maximum(z, 0.0)

    q = block(n1, p["wq"], p["bq"])
    k = block(n2, p["wk"], p["bk"])
    v = block(n3, p["wv"], p["bv"])
    scores = jnp.einsum("bci,bcj->bij", q, k, precision="highest")
    att = jax.nn.softmax(scores, axis=-1)
    o = jnp.einsum("bcj,bij->bci", v, att, precision="highest")
    y = jnp.maximum(
        jnp.einsum("oc,bch->boh", p["wc"], o, precision="highest")
        + p["bc"][None], 0.0)
    out = n3 + p["gamma"][0] * y
    return out[..., None]


if __name__ == "__main__":
    B, C, H = 2, 32, 16        # in_channel = 32 -> C//4 = 8; W = 1 (squeeze(3))
    key = jax.random.PRNGKey(0)
    k_n1, k_n2, k_n3, k_q, k_k, k_v, k_c = jax.random.split(key, 7)

    n1 = jax.random.normal(k_n1, (B, C, H, 1), jnp.float32)
    n2 = jax.random.normal(k_n2, (B, C, H, 1), jnp.float32)
    n3 = jax.random.normal(k_n3, (B, C, H, 1), jnp.float32)

    wq, bq = _fold_conv_bn(k_q, C, C // 4)
    wk, bk = _fold_conv_bn(k_k, C, C // 4)
    wv, bv = _fold_conv_bn(k_v, C, C)
    wc, bc = _fold_conv_bn(k_c, C, C)

    params = dict(
        wq=wq, bq=bq,
        wk=wk, bk=bk,
        wv=wv, bv=bv,
        wc=wc, bc=bc,
        # PyTorch inits gamma = 0; use 0.5 here so the attention path is
        # actually exercised / verified against the reference.
        gamma=jnp.full((1,), 0.5, jnp.float32),
    )

    out = jax.block_until_ready(interation_forward(n1, n2, n3, params))
    ref = _reference(n1, n2, n3, params)

    assert out.shape == (B, C, H, 1)
    # Tolerance 1e-3 (instead of 1e-4) only accounts for the EUP approximate
    # reciprocal in the softmax denominator; everything else is exact f32.
    assert jnp.allclose(out, ref, atol=1e-3, rtol=1e-3), float(
        jnp.max(jnp.abs(out - ref)))
    print("KERNEL_OK")
</pallas_src>

<mosaic_0001>
module attributes {stable_mosaic.version = 11 : i64} {
  func.func @_interation_kernel(%arg0: memref<2x32x16xf32, #tpu.memory_space<vmem>>, %arg1: memref<2x32x16xf32, #tpu.memory_space<vmem>>, %arg2: memref<2x32x16xf32, #tpu.memory_space<vmem>>, %arg3: memref<8x32xf32, #tpu.memory_space<vmem>>, %arg4: memref<8x1xf32, #tpu.memory_space<vmem>>, %arg5: memref<8x32xf32, #tpu.memory_space<vmem>>, %arg6: memref<8x1xf32, #tpu.memory_space<vmem>>, %arg7: memref<32x32xf32, #tpu.memory_space<vmem>>, %arg8: memref<32x1xf32, #tpu.memory_space<vmem>>, %arg9: memref<32x32xf32, #tpu.memory_space<vmem>>, %arg10: memref<32x1xf32, #tpu.memory_space<vmem>>, %arg11: memref<1xf32, #tpu.memory_space<smem>>, %arg12: memref<2x32x16xf32, #tpu.memory_space<vmem>>) attributes {dimension_semantics = [], scalar_prefetch = 0 : i64, scratch_operands = 0 : i64, tpu.core_type = #tpu.core_type<tc>} {
    %c0 = arith.constant 0 : index
    %c0_0 = arith.constant 0 : index
    %0 = vector.load %arg3[%c0, %c0_0] : memref<8x32xf32, #tpu.memory_space<vmem>>, vector<8x32xf32>
    %c0_1 = arith.constant 0 : index
    %c0_2 = arith.constant 0 : index
    %1 = vector.load %arg4[%c0_1, %c0_2] : memref<8x1xf32, #tpu.memory_space<vmem>>, vector<8x1xf32>
    %c0_3 = arith.constant 0 : index
    %c0_4 = arith.constant 0 : index
    %2 = vector.load %arg5[%c0_3, %c0_4] : memref<8x32xf32, #tpu.memory_space<vmem>>, vector<8x32xf32>
    %c0_5 = arith.constant 0 : index
    %c0_6 = arith.constant 0 : index
    %3 = vector.load %arg6[%c0_5, %c0_6] : memref<8x1xf32, #tpu.memory_space<vmem>>, vector<8x1xf32>
    %c0_7 = arith.constant 0 : index
    %c0_8 = arith.constant 0 : index
    %4 = vector.load %arg7[%c0_7, %c0_8] : memref<32x32xf32, #tpu.memory_space<vmem>>, vector<32x32xf32>
    %c0_9 = arith.constant 0 : index
    %c0_10 = arith.constant 0 : index
    %5 = vector.load %arg8[%c0_9, %c0_10] : memref<32x1xf32, #tpu.memory_space<vmem>>, vector<32x1xf32>
    %c0_11 = arith.constant 0 : index
    %c0_12 = arith.constant 0 : index
    %6 = vector.load %arg9[%c0_11, %c0_12] : memref<32x32xf32, #tpu.memory_space<vmem>>, vector<32x32xf32>
    %c0_13 = arith.constant 0 : index
    %c0_14 = arith.constant 0 : index
    %7 = vector.load %arg10[%c0_13, %c0_14] : memref<32x1xf32, #tpu.memory_space<vmem>>, vector<32x1xf32>
    %c0_15 = arith.constant 0 : index
    %8 = memref.load %arg11[%c0_15] : memref<1xf32, #tpu.memory_space<smem>>
    %c0_16 = arith.constant 0 : index
    %c0_17 = arith.constant 0 : index
    %c0_18 = arith.constant 0 : index
    %9 = vector.load %arg0[%c0_16, %c0_17, %c0_18] : memref<2x32x16xf32, #tpu.memory_space<vmem>>, vector<1x32x16xf32>
    %10 = vector.shape_cast %9 : vector<1x32x16xf32> to vector<32x16xf32>
    %c0_19 = arith.constant 0 : index
    %c0_20 = arith.constant 0 : index
    %c0_21 = arith.constant 0 : index
    %11 = vector.load %arg1[%c0_19, %c0_20, %c0_21] : memref<2x32x16xf32, #tpu.memory_space<vmem>>, vector<1x32x16xf32>
    %12 = vector.shape_cast %11 : vector<1x32x16xf32> to vector<32x16xf32>
    %c0_22 = arith.constant 0 : index
    %c0_23 = arith.constant 0 : index
    %c0_24 = arith.constant 0 : index
    %13 = vector.load %arg2[%c0_22, %c0_23, %c0_24] : memref<2x32x16xf32, #tpu.memory_space<vmem>>, vector<1x32x16xf32>
    %14 = vector.shape_cast %13 : vector<1x32x16xf32> to vector<32x16xf32>
    %cst = arith.constant dense<0.000000e+00> : vector<8x16xf32>
    %15 = tpu.matmul %0, %10, %cst {dimension_numbers = #tpu.dot_dimension_numbers<[1], [0], [0], [1], [0, 0, 1, 1], [], []>} : vector<8x32xf32>, vector<32x16xf32>, vector<8x16xf32> -> vector<8x16xf32>
    %16 = vector.broadcast %1 : vector<8x1xf32> to vector<8x16xf32>
    %17 = arith.addf %15, %16 : vector<8x16xf32>
    %cst_25 = arith.constant 0.000000e+00 : f32
    %18 = vector.broadcast %cst_25 : f32 to vector<8x16xf32>
    %19 = arith.maximumf %17, %18 : vector<8x16xf32>
    %cst_26 = arith.constant dense<0.000000e+00> : vector<8x16xf32>
    %20 = tpu.matmul %2, %12, %cst_26 {dimension_numbers = #tpu.dot_dimension_numbers<[1], [0], [0], [1], [0, 0, 1, 1], [], []>} : vector<8x32xf32>, vector<32x16xf32>, vector<8x16xf32> -> vector<8x16xf32>
    %21 = vector.broadcast %3 : vector<8x1xf32> to vector<8x16xf32>
    %22 = arith.addf %20, %21 : vector<8x16xf32>
    %cst_27 = arith.constant 0.000000e+00 : f32
    %23 = vector.broadcast %cst_27 : f32 to vector<8x16xf32>
    %24 = arith.maximumf %22, %23 : vector<8x16xf32>
    %cst_28 = arith.constant dense<0.000000e+00> : vector<32x16xf32>
    %25 = tpu.matmul %4, %14, %cst_28 {dimension_numbers = #tpu.dot_dimension_numbers<[1], [0], [0], [1], [0, 0, 1, 1], [], []>} : vector<32x32xf32>, vector<32x16xf32>, vector<32x16xf32> -> vector<32x16xf32>
    %26 = vector.broadcast %5 : vector<32x1xf32> to vector<32x16xf32>
    %27 = arith.addf %25, %26 : vector<32x16xf32>
    %cst_29 = arith.constant 0.000000e+00 : f32
    %28 = vector.broadcast %cst_29 : f32 to vector<32x16xf32>
    %29 = arith.maximumf %27, %28 : vector<32x16xf32>
    %cst_30 = arith.constant dense<0.000000e+00> : vector<16x16xf32>
    %30 = tpu.matmul %19, %24, %cst_30 {dimension_numbers = #tpu.dot_dimension_numbers<[0], [0], [1], [1], [0, 1, 1, 1], [], []>} : vector<8x16xf32>, vector<8x16xf32>, vector<16x16xf32> -> vector<16x16xf32>
    %cst_31 = arith.constant dense<0xFF800000> : vector<16xf32>
    %31 = vector.multi_reduction <maximumf>, %30, %cst_31 [1] : vector<16x16xf32> to vector<16xf32>
    %32 = vector.shape_cast %31 : vector<16xf32> to vector<16x1xf32>
    %33 = vector.broadcast %32 : vector<16x1xf32> to vector<16x16xf32>
    %34 = arith.subf %30, %33 : vector<16x16xf32>
    %35 = math.exp %34 : vector<16x16xf32>
    %cst_32 = arith.constant dense<0.000000e+00> : vector<16xf32>
    %36 = vector.multi_reduction <add>, %35, %cst_32 [1] : vector<16x16xf32> to vector<16xf32>
    %37 = vector.shape_cast %36 : vector<16xf32> to vector<16x1xf32>
    %38 = tpu.reciprocal %37 {approx = true} : vector<16x1xf32> -> vector<16x1xf32>
    %39 = vector.broadcast %38 : vector<16x1xf32> to vector<16x16xf32>
    %40 = arith.mulf %35, %39 : vector<16x16xf32>
    %cst_33 = arith.constant dense<0.000000e+00> : vector<32x16xf32>
    %41 = tpu.matmul %29, %40, %cst_33 {dimension_numbers = #tpu.dot_dimension_numbers<[1], [1], [0], [0], [0, 0, 1, 0], [], []>} : vector<32x16xf32>, vector<16x16xf32>, vector<32x16xf32> -> vector<32x16xf32>
    %cst_34 = arith.constant dense<0.000000e+00> : vector<32x16xf32>
    %42 = tpu.matmul %6, %41, %cst_34 {dimension_numbers = #tpu.dot_dimension_numbers<[1], [0], [0], [1], [0, 0, 1, 1], [], []>} : vector<32x32xf32>, vector<32x16xf32>, vector<32x16xf32> -> vector<32x16xf32>
    %43 = vector.broadcast %7 : vector<32x1xf32> to vector<32x16xf32>
    %44 = arith.addf %42, %43 : vector<32x16xf32>
    %cst_35 = arith.constant 0.000000e+00 : f32
    %45 = vector.broadcast %cst_35 : f32 to vector<32x16xf32>
    %46 = arith.maximumf %44, %45 : vector<32x16xf32>
    %47 = vector.broadcast %8 : f32 to vector<32x16xf32>
    %48 = arith.mulf %47, %46 : vector<32x16xf32>
    %49 = arith.addf %14, %48 : vector<32x16xf32>
    %c0_36 = arith.constant 0 : index
    %c0_37 = arith.constant 0 : index
    %c0_38 = arith.constant 0 : index
    %50 = vector.load %arg12[%c0_36, %c0_37, %c0_38] : memref<2x32x16xf32, #tpu.memory_space<vmem>>, vector<1x32x16xf32>
    %51 = vector.shape_cast %50 : vector<1x32x16xf32> to vector<32x16xf32>
    %52 = vector.shape_cast %49 : vector<32x16xf32> to vector<1x32x16xf32>
    tpu.vector_store %arg12[%c0_36, %c0_37, %c0_38], %52 {strides = array<i32>} : memref<2x32x16xf32, #tpu.memory_space<vmem>>, vector<1x32x16xf32>,
    %c1 = arith.constant 1 : index
    %c0_39 = arith.constant 0 : index
    %c0_40 = arith.constant 0 : index
    %53 = vector.load %arg0[%c1, %c0_39, %c0_40] : memref<2x32x16xf32, #tpu.memory_space<vmem>>, vector<1x32x16xf32>
    %54 = vector.shape_cast %53 : vector<1x32x16xf32> to vector<32x16xf32>
    %c1_41 = arith.constant 1 : index
    %c0_42 = arith.constant 0 : index
    %c0_43 = arith.constant 0 : index
    %55 = vector.load %arg1[%c1_41, %c0_42, %c0_43] : memref<2x32x16xf32, #tpu.memory_space<vmem>>, vector<1x32x16xf32>
    %56 = vector.shape_cast %55 : vector<1x32x16xf32> to vector<32x16xf32>
    %c1_44 = arith.constant 1 : index
    %c0_45 = arith.constant 0 : index
    %c0_46 = arith.constant 0 : index
    %57 = vector.load %arg2[%c1_44, %c0_45, %c0_46] : memref<2x32x16xf32, #tpu.memory_space<vmem>>, vector<1x32x16xf32>
    %58 = vector.shape_cast %57 : vector<1x32x16xf32> to vector<32x16xf32>
    %cst_47 = arith.constant dense<0.000000e+00> : vector<8x16xf32>
    %59 = tpu.matmul %0, %54, %cst_47 {dimension_numbers = #tpu.dot_dimension_numbers<[1], [0], [0], [1], [0, 0, 1, 1], [], []>} : vector<8x32xf32>, vector<32x16xf32>, vector<8x16xf32> -> vector<8x16xf32>
    %60 = vector.broadcast %1 : vector<8x1xf32> to vector<8x16xf32>
    %61 = arith.addf %59, %60 : vector<8x16xf32>
    %cst_48 = arith.constant 0.000000e+00 : f32
    %62 = vector.broadcast %cst_48 : f32 to vector<8x16xf32>
    %63 = arith.maximumf %61, %62 : vector<8x16xf32>
    %cst_49 = arith.constant dense<0.000000e+00> : vector<8x16xf32>
    %64 = tpu.matmul %2, %56, %cst_49 {dimension_numbers = #tpu.dot_dimension_numbers<[1], [0], [0], [1], [0, 0, 1, 1], [], []>} : vector<8x32xf32>, vector<32x16xf32>, vector<8x16xf32> -> vector<8x16xf32>
    %65 = vector.broadcast %3 : vector<8x1xf32> to vector<8x16xf32>
    %66 = arith.addf %64, %65 : vector<8x16xf32>
    %cst_50 = arith.constant 0.000000e+00 : f32
    %67 = vector.broadcast %cst_50 : f32 to vector<8x16xf32>
    %68 = arith.maximumf %66, %67 : vector<8x16xf32>
    %cst_51 = arith.constant dense<0.000000e+00> : vector<32x16xf32>
    %69 = tpu.matmul %4, %58, %cst_51 {dimension_numbers = #tpu.dot_dimension_numbers<[1], [0], [0], [1], [0, 0, 1, 1], [], []>} : vector<32x32xf32>, vector<32x16xf32>, vector<32x16xf32> -> vector<32x16xf32>
    %70 = vector.broadcast %5 : vector<32x1xf32> to vector<32x16xf32>
    %71 = arith.addf %69, %70 : vector<32x16xf32>
    %cst_52 = arith.constant 0.000000e+00 : f32
    %72 = vector.broadcast %cst_52 : f32 to vector<32x16xf32>
    %73 = arith.maximumf %71, %72 : vector<32x16xf32>
    %cst_53 = arith.constant dense<0.000000e+00> : vector<16x16xf32>
    %74 = tpu.matmul %63, %68, %cst_53 {dimension_numbers = #tpu.dot_dimension_numbers<[0], [0], [1], [1], [0, 1, 1, 1], [], []>} : vector<8x16xf32>, vector<8x16xf32>, vector<16x16xf32> -> vector<16x16xf32>
    %cst_54 = arith.constant dense<0xFF800000> : vector<16xf32>
    %75 = vector.multi_reduction <maximumf>, %74, %cst_54 [1] : vector<16x16xf32> to vector<16xf32>
    %76 = vector.shape_cast %75 : vector<16xf32> to vector<16x1xf32>
    %77 = vector.broadcast %76 : vector<16x1xf32> to vector<16x16xf32>
    %78 = arith.subf %74, %77 : vector<16x16xf32>
    %79 = math.exp %78 : vector<16x16xf32>
    %cst_55 = arith.constant dense<0.000000e+00> : vector<16xf32>
    %80 = vector.multi_reduction <add>, %79, %cst_55 [1] : vector<16x16xf32> to vector<16xf32>
    %81 = vector.shape_cast %80 : vector<16xf32> to vector<16x1xf32>
    %82 = tpu.reciprocal %81 {approx = true} : vector<16x1xf32> -> vector<16x1xf32>
    %83 = vector.broadcast %82 : vector<16x1xf32> to vector<16x16xf32>
    %84 = arith.mulf %79, %83 : vector<16x16xf32>
    %cst_56 = arith.constant dense<0.000000e+00> : vector<32x16xf32>
    %85 = tpu.matmul %73, %84, %cst_56 {dimension_numbers = #tpu.dot_dimension_numbers<[1], [1], [0], [0], [0, 0, 1, 0], [], []>} : vector<32x16xf32>, vector<16x16xf32>, vector<32x16xf32> -> vector<32x16xf32>
    %cst_57 = arith.constant dense<0.000000e+00> : vector<32x16xf32>
    %86 = tpu.matmul %6, %85, %cst_57 {dimension_numbers = #tpu.dot_dimension_numbers<[1], [0], [0], [1], [0, 0, 1, 1], [], []>} : vector<32x32xf32>, vector<32x16xf32>, vector<32x16xf32> -> vector<32x16xf32>
    %87 = vector.broadcast %7 : vector<32x1xf32> to vector<32x16xf32>
    %88 = arith.addf %86, %87 : vector<32x16xf32>
    %cst_58 = arith.constant 0.000000e+00 : f32
    %89 = vector.broadcast %cst_58 : f32 to vector<32x16xf32>
    %90 = arith.maximumf %88, %89 : vector<32x16xf32>
    %91 = vector.broadcast %8 : f32 to vector<32x16xf32>
    %92 = arith.mulf %91, %90 : vector<32x16xf32>
    %93 = arith.addf %58, %92 : vector<32x16xf32>
    %c1_59 = arith.constant 1 : index
    %c0_60 = arith.constant 0 : index
    %c0_61 = arith.constant 0 : index
    %94 = vector.load %arg12[%c1_59, %c0_60, %c0_61] : memref<2x32x16xf32, #tpu.memory_space<vmem>>, vector<1x32x16xf32>
    %95 = vector.shape_cast %94 : vector<1x32x16xf32> to vector<32x16xf32>
    %96 = vector.shape_cast %93 : vector<32x16xf32> to vector<1x32x16xf32>
    tpu.vector_store %arg12[%c1_59, %c0_60, %c0_61], %96 {strides = array<i32>} : memref<2x32x16xf32, #tpu.memory_space<vmem>>, vector<1x32x16xf32>,
    return
  }
}

</mosaic_0001>

<llo_original>
// kernel: tpu_custom_call.1
$region0: #{tpu_custom_call.1}
  #allocation0 [shape = 'u32[]', space=smem, size = 0x4, offset = 0x4, fixed_abs, tag = 'smem constant byte address 0x4 - core index']
  #allocation1 [shape = 'u32[144,128]{1,0:T(1,128)}', space=vmem, size = 0x12000, scoped, tag = 'internal scratch']
  #allocation2 [shape = 'f32[1]{0:T(128)S(6)}', space=smem, size = 0x200, scoped, tag = 'scoped memory for tpu_custom_call.1']
  %s0 = inlined_call_operand.vmem [shape: f32[2,32,16], index: 0, kind: input, shape index: {}]
  %s1 = inlined_call_operand.vmem [shape: f32[2,32,16], index: 1, kind: input, shape index: {}]
  %s2 = inlined_call_operand.vmem [shape: f32[2,32,16], index: 2, kind: input, shape index: {}]
  %s3 = inlined_call_operand.vmem [shape: f32[8,32], index: 3, kind: input, shape index: {}]
  %s4 = inlined_call_operand.vmem [shape: f32[8,1], index: 4, kind: input, shape index: {}]
  %s5 = inlined_call_operand.vmem [shape: f32[8,32], index: 5, kind: input, shape index: {}]
  %s6 = inlined_call_operand.vmem [shape: f32[8,1], index: 6, kind: input, shape index: {}]
  %s7 = inlined_call_operand.vmem [shape: f32[32,32], index: 7, kind: input, shape index: {}]
  %s8 = inlined_call_operand.vmem [shape: f32[32,1], index: 8, kind: input, shape index: {}]
  %s9 = inlined_call_operand.vmem [shape: f32[32,32], index: 9, kind: input, shape index: {}]
  %s10 = inlined_call_operand.vmem [shape: f32[32,1], index: 10, kind: input, shape index: {}]
  %s11 = inlined_call_operand.<no memory space> [shape: f32[1], index: 11, kind: input, shape index: {}]
  %s12 = inlined_call_operand.vmem [shape: f32[2,32,16], index: 12, kind: output, shape index: {}]
  %s13 = sld [smem:[#allocation0]]
  $region58: #{tpu_custom_call.1} parent=0
    _
  %s15 = ssub.s32 1, %s13
  %s16 = scalar_select 0, %s15, %s13
  %17 = sst [smem:[#allocation2]] %s11
  // Predicated region
  $region2: #{tpu_custom_call.1} parent=0 // pred_check
    _
  $region3: #{tpu_custom_call.1} parent=0 // pred_check_branch
    %19 = sbr.rel (0) target = $region5
  $region4: #{tpu_custom_call.1} parent=0 // pred_region
    _
  $region5: #{tpu_custom_call.1} parent=0 // pred_fallthru
    _
  // Predicated region
  $region6: #{tpu_custom_call.1} parent=0 // pred_check
    _
  $region7: #{tpu_custom_call.1} parent=0 // pred_check_branch
    %21 = sbr.rel (0) target = $region9
  $region8: #{tpu_custom_call.1} parent=0 // pred_region
    _
  $region9: #{tpu_custom_call.1} parent=0 // pred_fallthru
    _
  // Predicated region
  $region10: #{tpu_custom_call.1} parent=0 // pred_check
    _
  $region11: #{tpu_custom_call.1} parent=0 // pred_check_branch
    %23 = sbr.rel (0) target = $region13
  $region12: #{tpu_custom_call.1} parent=0 // pred_region
    _
  $region13: #{tpu_custom_call.1} parent=0 // pred_fallthru
    _
  // Predicated region
  $region14: #{tpu_custom_call.1} parent=0 // pred_check
    _
  $region15: #{tpu_custom_call.1} parent=0 // pred_check_branch
    %25 = sbr.rel (0) target = $region17
  $region16: #{tpu_custom_call.1} parent=0 // pred_region
    _
  $region17: #{tpu_custom_call.1} parent=0 // pred_fallthru
    _
  // Predicated region
  $region18: #{tpu_custom_call.1} parent=0 // pred_check
    _
  $region19: #{tpu_custom_call.1} parent=0 // pred_check_branch
    %27 = sbr.rel (0) target = $region21
  $region20: #{tpu_custom_call.1} parent=0 // pred_region
    _
  $region21: #{tpu_custom_call.1} parent=0 // pred_fallthru
    _
  // Predicated region
  $region22: #{tpu_custom_call.1} parent=0 // pred_check
    _
  $region23: #{tpu_custom_call.1} parent=0 // pred_check_branch
    %29 = sbr.rel (0) target = $region25
  $region24: #{tpu_custom_call.1} parent=0 // pred_region
    _
  $region25: #{tpu_custom_call.1} parent=0 // pred_fallthru
    _
  // Predicated region
  $region26: #{tpu_custom_call.1} parent=0 // pred_check
    _
  $region27: #{tpu_custom_call.1} parent=0 // pred_check_branch
    %31 = sbr.rel (0) target = $region29
  $region28: #{tpu_custom_call.1} parent=0 // pred_region
    _
  $region29: #{tpu_custom_call.1} parent=0 // pred_fallthru
    _
  // Predicated region
  $region30: #{tpu_custom_call.1} parent=0 // pred_check
    _
  $region31: #{tpu_custom_call.1} parent=0 // pred_check_branch
    %33 = sbr.rel (0) target = $region33
  $region32: #{tpu_custom_call.1} parent=0 // pred_region
    _
  $region33: #{tpu_custom_call.1} parent=0 // pred_fallthru
    _
  // Predicated region
  $region34: #{tpu_custom_call.1} parent=0 // pred_check
    _
  $region35: #{tpu_custom_call.1} parent=0 // pred_check_branch
    %35 = sbr.rel (0) target = $region37
  $region36: #{tpu_custom_call.1} parent=0 // pred_region
    _
  $region37: #{tpu_custom_call.1} parent=0 // pred_fallthru
    _
  // Predicated region
  $region38: #{tpu_custom_call.1} parent=0 // pred_check
    _
  $region39: #{tpu_custom_call.1} parent=0 // pred_check_branch
    %37 = sbr.rel (0) target = $region41
  $region40: #{tpu_custom_call.1} parent=0 // pred_region
    _
  $region41: #{tpu_custom_call.1} parent=0 // pred_fallthru
    _
  // Predicated region
  $region42: #{tpu_custom_call.1} parent=0 // pred_check
    _
  $region43: #{tpu_custom_call.1} parent=0 // pred_check_branch
    %39 = sbr.rel (0) target = $region45
  $region44: #{tpu_custom_call.1} parent=0 // pred_region
    _
  $region45: #{tpu_custom_call.1} parent=0 // pred_fallthru
    _
  // Predicated region
  $region46: #{tpu_custom_call.1} parent=0 // pred_check
    _
  $region47: #{tpu_custom_call.1} parent=0 // pred_check_branch
    %41 = sbr.rel (0) target = $region49
  $region48: #{tpu_custom_call.1} parent=0 // pred_region
    _
  $region49: #{tpu_custom_call.1} parent=0 // pred_fallthru
    _
  %v42 = vld [vmem:[%s3] sm:$0xff]
  %v43 = vld [vmem:[%s4] sm:$0xff]
  %v44 = vld [vmem:[%s5] sm:$0xff]
  %v45 = vld [vmem:[%s6] sm:$0xff]
  %v46 = vld [vmem:[%s7] sm:$0xff]
  %v47 = vld [vmem:[%s7 + $0x8] sm:$0xff]
  %v48 = vld [vmem:[%s7 + $0x10] sm:$0xff]
  %v49 = vld [vmem:[%s7 + $0x18] sm:$0xff]
  %v50 = vld [vmem:[%s8] sm:$0xff]
  %v51 = vld [vmem:[%s8 + $0x8] sm:$0xff]
  %v52 = vld [vmem:[%s8 + $0x10] sm:$0xff]
  %v53 = vld [vmem:[%s8 + $0x18] sm:$0xff]
  %v54 = vld [vmem:[%s9] sm:$0xff]
  %v55 = vld [vmem:[%s9 + $0x8] sm:$0xff]
  %v56 = vld [vmem:[%s9 + $0x10] sm:$0xff]
  %v57 = vld [vmem:[%s9 + $0x18] sm:$0xff]
  %v58 = vld [vmem:[%s10] sm:$0xff]
  %v59 = vld [vmem:[%s10 + $0x8] sm:$0xff]
  %v60 = vld [vmem:[%s10 + $0x10] sm:$0xff]
  %v61 = vld [vmem:[%s10 + $0x18] sm:$0xff]
  %s62 = sld [smem:[#allocation2]]
  %v63 = vld [vmem:[%s0] sm:$0xff]
  %v64 = vld [vmem:[%s0 + $0x8] sm:$0xff]
  %v65 = vld [vmem:[%s0 + $0x10] sm:$0xff]
  %v66 = vld [vmem:[%s0 + $0x18] sm:$0xff]
  %v67 = vld [vmem:[%s1] sm:$0xff]
  %v68 = vld [vmem:[%s1 + $0x8] sm:$0xff]
  %v69 = vld [vmem:[%s1 + $0x10] sm:$0xff]
  %v70 = vld [vmem:[%s1 + $0x18] sm:$0xff]
  %v71 = vld [vmem:[%s2] sm:$0xff]
  %v72 = vld [vmem:[%s2 + $0x8] sm:$0xff]
  %v73 = vld [vmem:[%s2 + $0x10] sm:$0xff]
  %v74 = vld [vmem:[%s2 + $0x18] sm:$0xff]
  %76 = vset.pattern.permute.xlu0 0
  %77 = vperm.xlu0 %76, %v43
  %v78 = vpop.permute.xlu0 %77
  %vm80 = vcmask 261120
  %v82 = vsel %vm80, %v42, 0
  %84 = vmatprep.subr.mxu0 0.0
  %85 = vmatpush1.msra.mxu0 %v63
  %86 = vmatprep.subr.mxu0 0.0
  %87 = vmatpush1.msra.mxu0 %v64
  %88 = vmatprep.subr.mxu0 0.0
  %89 = vmatpush1.msra.mxu0 %v65
  %90 = vmatprep.subr.mxu0 0.0
  %91 = vmatpush1.msra.mxu0 %v66
  %92 = vmatprep.subr.mxu0 0.0
  %93 = vmatpush1.msra.mxu0 0.0
  %94 = vmatprep.subr.mxu0 0.0
  %95 = vmatpush1.msra.mxu0 0.0
  %96 = vmatprep.subr.mxu0 0.0
  %97 = vmatpush1.msra.mxu0 0.0
  %98 = vmatprep.subr.mxu0 0.0
  %99 = vmatpush1.msra.mxu0 0.0
  %100 = vmatprep.subr.mxu0 0.0
  %101 = vmatpush1.msra.mxu0 0.0
  %102 = vmatprep.subr.mxu0 0.0
  %103 = vmatpush1.msra.mxu0 0.0
  %104 = vmatprep.subr.mxu0 0.0
  %105 = vmatpush1.msra.mxu0 0.0
  %106 = vmatprep.subr.mxu0 0.0
  %107 = vmatpush1.msra.mxu0 0.0
  %108 = vmatprep.subr.mxu0 0.0
  %109 = vmatpush1.msra.mxu0 0.0
  %110 = vmatprep.subr.mxu0 0.0
  %111 = vmatpush1.msra.mxu0 0.0
  %112 = vmatprep.subr.mxu0 0.0
  %113 = vmatpush1.msra.mxu0 0.0
  %114 = vmatprep.subr.mxu0 0.0
  %115 = vmatpush1.msra.mxu0 0.0
  %116 = vmatprep.subr.mxu0 0.0
  %117 = vmatpush1.msra.mxu0 0.0
  %118 = vmatprep.subr.mxu0 0.0
  %119 = vmatpush1.msra.mxu0 0.0
  %120 = vmatprep.subr.mxu0 0.0
  %121 = vmatpush1.msra.mxu0 0.0
  %122 = vmatprep.subr.mxu0 0.0
  %123 = vmatpush1.msra.mxu0 0.0
  %124 = vmatprep.subr.mxu0 0.0
  %125 = vmatpush1.msra.mxu0 0.0
  %126 = vmatprep.subr.mxu0 0.0
  %127 = vmatpush1.msra.mxu0 0.0
  %128 = vmatprep.subr.mxu0 0.0
  %129 = vmatpush1.msra.mxu0 0.0
  %130 = vmatprep.subr.mxu0 0.0
  %131 = vmatpush1.msra.mxu0 0.0
  %132 = vmatprep.subr.mxu0 0.0
  %133 = vmatpush1.msra.mxu0 0.0
  %134 = vmatprep.subr.mxu0 0.0
  %135 = vmatpush1.msra.mxu0 0.0
  %136 = vmatprep.subr.mxu0 0.0
  %137 = vmatpush1.msra.mxu0 0.0
  %138 = vmatprep.subr.mxu0 0.0
  %139 = vmatpush1.msra.mxu0 0.0
  %140 = vmatprep.subr.mxu0 0.0
  %141 = vmatpush1.msra.mxu0 0.0
  %142 = vmatprep.subr.mxu0 0.0
  %143 = vmatpush1.msra.mxu0 0.0
  %144 = vmatprep.subr.mxu0 0.0
  %145 = vmatpush1.msra.mxu0 0.0
  %146 = vmatprep.subr.mxu0 0.0
  %147 = vmatpush1.msra.mxu0 0.0
  %148 = vmatprep.mubr.f32.mxu0 0.0
  %149 = vmatmul.mubr.f32.gmra.mrb[0].mxu0 %v82
  %v150 = vpop.f32.mrb[0].mxu0
  %v151 = vadd.f32 %v78, %v150
  %v152 = vpop.f32.mrb[0].mxu0
  %153 = vdwg.mxu0
  %v154 = vmax.f32 %v151, 0.0
  %156 = vset.pattern.permute.xlu0 0
  %157 = vperm.xlu0 %156, %v45
  %v158 = vpop.permute.xlu0 %157
  %v161 = vsel %vm80, %v44, 0
  %163 = vmatprep.subr.mxu0 0.0
  %164 = vmatpush1.msra.mxu0 %v67
  %165 = vmatprep.subr.mxu0 0.0
  %166 = vmatpush1.msra.mxu0 %v68
  %167 = vmatprep.subr.mxu0 0.0
  %168 = vmatpush1.msra.mxu0 %v69
  %169 = vmatprep.subr.mxu0 0.0
  %170 = vmatpush1.msra.mxu0 %v70
  %171 = vmatprep.subr.mxu0 0.0
  %172 = vmatpush1.msra.mxu0 0.0
  %173 = vmatprep.subr.mxu0 0.0
  %174 = vmatpush1.msra.mxu0 0.0
  %175 = vmatprep.subr.mxu0 0.0
  %176 = vmatpush1.msra.mxu0 0.0
  %177 = vmatprep.subr.mxu0 0.0
  %178 = vmatpush1.msra.mxu0 0.0
  %179 = vmatprep.subr.mxu0 0.0
  %180 = vmatpush1.msra.mxu0 0.0
  %181 = vmatprep.subr.mxu0 0.0
  %182 = vmatpush1.msra.mxu0 0.0
  %183 = vmatprep.subr.mxu0 0.0
  %184 = vmatpush1.msra.mxu0 0.0
  %185 = vmatprep.subr.mxu0 0.0
  %186 = vmatpush1.msra.mxu0 0.0
  %187 = vmatprep.subr.mxu0 0.0
  %188 = vmatpush1.msra.mxu0 0.0
  %189 = vmatprep.subr.mxu0 0.0
  %190 = vmatpush1.msra.mxu0 0.0
  %191 = vmatprep.subr.mxu0 0.0
  %192 = vmatpush1.msra.mxu0 0.0
  %193 = vmatprep.subr.mxu0 0.0
  %194 = vmatpush1.msra.mxu0 0.0
  %195 = vmatprep.subr.mxu0 0.0
  %196 = vmatpush1.msra.mxu0 0.0
  %197 = vmatprep.subr.mxu0 0.0
  %198 = vmatpush1.msra.mxu0 0.0
  %199 = vmatprep.subr.mxu0 0.0
  %200 = vmatpush1.msra.mxu0 0.0
  %201 = vmatprep.subr.mxu0 0.0
  %202 = vmatpush1.msra.mxu0 0.0
  %203 = vmatprep.subr.mxu0 0.0
  %204 = vmatpush1.msra.mxu0 0.0
  %205 = vmatprep.subr.mxu0 0.0
  %206 = vmatpush1.msra.mxu0 0.0
  %207 = vmatprep.subr.mxu0 0.0
  %208 = vmatpush1.msra.mxu0 0.0
  %209 = vmatprep.subr.mxu0 0.0
  %210 = vmatpush1.msra.mxu0 0.0
  %211 = vmatprep.subr.mxu0 0.0
  %212 = vmatpush1.msra.mxu0 0.0
  %213 = vmatprep.subr.mxu0 0.0
  %214 = vmatpush1.msra.mxu0 0.0
  %215 = vmatprep.subr.mxu0 0.0
  %216 = vmatpush1.msra.mxu0 0.0
  %217 = vmatprep.subr.mxu0 0.0
  %218 = vmatpush1.msra.mxu0 0.0
  %219 = vmatprep.subr.mxu0 0.0
  %220 = vmatpush1.msra.mxu0 0.0
  %221 = vmatprep.subr.mxu0 0.0
  %222 = vmatpush1.msra.mxu0 0.0
  %223 = vmatprep.subr.mxu0 0.0
  %224 = vmatpush1.msra.mxu0 0.0
  %225 = vmatprep.subr.mxu0 0.0
  %226 = vmatpush1.msra.mxu0 0.0
  %227 = vmatprep.mubr.f32.mxu0 0.0
  %228 = vmatmul.mubr.f32.gmra.mrb[0].mxu0 %v161
  %v229 = vpop.f32.mrb[0].mxu0
  %v230 = vadd.f32 %v158, %v229
  %v231 = vpop.f32.mrb[0].mxu0
  %232 = vdwg.mxu0
  %v233 = vmax.f32 %v230, 0.0
  %235 = vset.pattern.permute.xlu0 0
  %236 = vperm.xlu0 %235, %v50
  %v237 = vpop.permute.xlu0 %236
  %240 = vset.pattern.permute.xlu0 0
  %241 = vperm.xlu0 %240, %v51
  %v242 = vpop.permute.xlu0 %241
  %245 = vset.pattern.permute.xlu0 0
  %246 = vperm.xlu0 %245, %v52
  %v247 = vpop.permute.xlu0 %246
  %250 = vset.pattern.permute.xlu0 0
  %251 = vperm.xlu0 %250, %v53
  %v252 = vpop.permute.xlu0 %251
  %v255 = vsel %vm80, %v46, 0
  %v258 = vsel %vm80, %v47, 0
  %v261 = vsel %vm80, %v48, 0
  %v264 = vsel %vm80, %v49, 0
  %266 = vmatprep.subr.mxu0 0.0
  %267 = vmatpush1.msra.mxu0 %v71
  %268 = vmatprep.subr.mxu0 0.0
  %269 = vmatpush1.msra.mxu0 %v72
  %270 = vmatprep.subr.mxu0 0.0
  %271 = vmatpush1.msra.mxu0 %v73
  %272 = vmatprep.subr.mxu0 0.0
  %273 = vmatpush1.msra.mxu0 %v74
  %274 = vmatprep.subr.mxu0 0.0
  %275 = vmatpush1.msra.mxu0 0.0
  %276 = vmatprep.subr.mxu0 0.0
  %277 = vmatpush1.msra.mxu0 0.0
  %278 = vmatprep.subr.mxu0 0.0
  %279 = vmatpush1.msra.mxu0 0.0
  %280 = vmatprep.subr.mxu0 0.0
  %281 = vmatpush1.msra.mxu0 0.0
  %282 = vmatprep.subr.mxu0 0.0
  %283 = vmatpush1.msra.mxu0 0.0
  %284 = vmatprep.subr.mxu0 0.0
  %285 = vmatpush1.msra.mxu0 0.0
  %286 = vmatprep.subr.mxu0 0.0
  %287 = vmatpush1.msra.mxu0 0.0
  %288 = vmatprep.subr.mxu0 0.0
  %289 = vmatpush1.msra.mxu0 0.0
  %290 = vmatprep.subr.mxu0 0.0
  %291 = vmatpush1.msra.mxu0 0.0
  %292 = vmatprep.subr.mxu0 0.0
  %293 = vmatpush1.msra.mxu0 0.0
  %294 = vmatprep.subr.mxu0 0.0
  %295 = vmatpush1.msra.mxu0 0.0
  %296 = vmatprep.subr.mxu0 0.0
  %297 = vmatpush1.msra.mxu0 0.0
  %298 = vmatprep.subr.mxu0 0.0
  %299 = vmatpush1.msra.mxu0 0.0
  %300 = vmatprep.subr.mxu0 0.0
  %301 = vmatpush1.msra.mxu0 0.0
  %302 = vmatprep.subr.mxu0 0.0
  %303 = vmatpush1.msra.mxu0 0.0
  %304 = vmatprep.subr.mxu0 0.0
  %305 = vmatpush1.msra.mxu0 0.0
  %306 = vmatprep.subr.mxu0 0.0
  %307 = vmatpush1.msra.mxu0 0.0
  %308 = vmatprep.subr.mxu0 0.0
  %309 = vmatpush1.msra.mxu0 0.0
  %310 = vmatprep.subr.mxu0 0.0
  %311 = vmatpush1.msra.mxu0 0.0
  %312 = vmatprep.subr.mxu0 0.0
  %313 = vmatpush1.msra.mxu0 0.0
  %314 = vmatprep.subr.mxu0 0.0
  %315 = vmatpush1.msra.mxu0 0.0
  %316 = vmatprep.subr.mxu0 0.0
  %317 = vmatpush1.msra.mxu0 0.0
  %318 = vmatprep.subr.mxu0 0.0
  %319 = vmatpush1.msra.mxu0 0.0
  %320 = vmatprep.subr.mxu0 0.0
  %321 = vmatpush1.msra.mxu0 0.0
  %322 = vmatprep.subr.mxu0 0.0
  %323 = vmatpush1.msra.mxu0 0.0
  %324 = vmatprep.subr.mxu0 0.0
  %325 = vmatpush1.msra.mxu0 0.0
  %326 = vmatprep.subr.mxu0 0.0
  %327 = vmatpush1.msra.mxu0 0.0
  %328 = vmatprep.subr.mxu0 0.0
  %329 = vmatpush1.msra.mxu0 0.0
  %330 = vmatprep.mubr.f32.mxu0 0.0
  %331 = vmatmul.mubr.f32.gmra.mrb[0].mxu0 %v255
  %v332 = vpop.f32.mrb[0].mxu0
  %v333 = vadd.f32 %v237, %v332
  %v334 = vpop.f32.mrb[0].mxu0
  %335 = vmatprep.mubr.f32.mxu0 0.0
  %336 = vmatmul.mubr.f32.gmra.mrb[0].mxu0 %v258
  %v337 = vpop.f32.mrb[0].mxu0
  %v338 = vadd.f32 %v242, %v337
  %v339 = vpop.f32.mrb[0].mxu0
  %340 = vmatprep.mubr.f32.mxu0 0.0
  %341 = vmatmul.mubr.f32.gmra.mrb[0].mxu0 %v261
  %v342 = vpop.f32.mrb[0].mxu0
  %v343 = vadd.f32 %v247, %v342
  %v344 = vpop.f32.mrb[0].mxu0
  %345 = vmatprep.mubr.f32.mxu0 0.0
  %346 = vmatmul.mubr.f32.gmra.mrb[0].mxu0 %v264
  %v347 = vpop.f32.mrb[0].mxu0
  %v348 = vadd.f32 %v252, %v347
  %v349 = vpop.f32.mrb[0].mxu0
  %350 = vdwg.mxu0
  %v351 = vmax.f32 %v333, 0.0
  %v352 = vmax.f32 %v338, 0.0
  %v353 = vmax.f32 %v343, 0.0
  %v354 = vmax.f32 %v348, 0.0
  %355 = vxpose.xlu0.b32.start [1/16] %v154, 128
  %356 = vxpose.xlu0.b32.cont [2/16] 0.0, 128
  %357 = vxpose.xlu0.b32.cont [3/16] 0.0, 128
  %358 = vxpose.xlu0.b32.cont [4/16] 0.0, 128
  %359 = vxpose.xlu0.b32.cont [5/16] 0.0, 128
  %360 = vxpose.xlu0.b32.cont [6/16] 0.0, 128
  %361 = vxpose.xlu0.b32.cont [7/16] 0.0, 128
  %362 = vxpose.xlu0.b32.cont [8/16] 0.0, 128
  %363 = vxpose.xlu0.b32.cont [9/16] 0.0, 128
  %364 = vxpose.xlu0.b32.cont [10/16] 0.0, 128
  %365 = vxpose.xlu0.b32.cont [11/16] 0.0, 128
  %366 = vxpose.xlu0.b32.cont [12/16] 0.0, 128
  %367 = vxpose.xlu0.b32.cont [13/16] 0.0, 128
  %368 = vxpose.xlu0.b32.cont [14/16] 0.0, 128
  %369 = vxpose.xlu0.b32.cont [15/16] 0.0, 128
  %370 = vxpose.xlu0.b32.end [16/16] 0.0, 128
  %v371 = vpop.trf.xlu0
  %v372 = vpop.trf.xlu0
  %v373 = vpop.trf.xlu0
  %v374 = vpop.trf.xlu0
  %v375 = vpop.trf.xlu0
  %v376 = vpop.trf.xlu0
  %v377 = vpop.trf.xlu0
  %v378 = vpop.trf.xlu0
  %v379 = vpop.trf.xlu0
  %v380 = vpop.trf.xlu0
  %v381 = vpop.trf.xlu0
  %v382 = vpop.trf.xlu0
  %v383 = vpop.trf.xlu0
  %v384 = vpop.trf.xlu0
  %v385 = vpop.trf.xlu0
  %v386 = vpop.trf.xlu0
  %vm387 = vcmask 64512
  %v389 = vsel %vm387, %v371, 0
  %v392 = vsel %vm387, %v372, 0
  %394 = vmatprep.subr.mxu0 0.0
  %395 = vmatpush1.msra.mxu0 %v233
  %396 = vmatprep.subr.mxu0 0.0
  %397 = vmatpush1.msra.mxu0 0.0
  %398 = vmatprep.subr.mxu0 0.0
  %399 = vmatpush1.msra.mxu0 0.0
  %400 = vmatprep.subr.mxu0 0.0
  %401 = vmatpush1.msra.mxu0 0.0
  %402 = vmatprep.subr.mxu0 0.0
  %403 = vmatpush1.msra.mxu0 0.0
  %404 = vmatprep.subr.mxu0 0.0
  %405 = vmatpush1.msra.mxu0 0.0
  %406 = vmatprep.subr.mxu0 0.0
  %407 = vmatpush1.msra.mxu0 0.0
  %408 = vmatprep.subr.mxu0 0.0
  %409 = vmatpush1.msra.mxu0 0.0
  %410 = vmatprep.subr.mxu0 0.0
  %411 = vmatpush1.msra.mxu0 0.0
  %412 = vmatprep.subr.mxu0 0.0
  %413 = vmatpush1.msra.mxu0 0.0
  %414 = vmatprep.subr.mxu0 0.0
  %415 = vmatpush1.msra.mxu0 0.0
  %416 = vmatprep.subr.mxu0 0.0
  %417 = vmatpush1.msra.mxu0 0.0
  %418 = vmatprep.subr.mxu0 0.0
  %419 = vmatpush1.msra.mxu0 0.0
  %420 = vmatprep.subr.mxu0 0.0
  %421 = vmatpush1.msra.mxu0 0.0
  %422 = vmatprep.subr.mxu0 0.0
  %423 = vmatpush1.msra.mxu0 0.0
  %424 = vmatprep.subr.mxu0 0.0
  %425 = vmatpush1.msra.mxu0 0.0
  %426 = vmatprep.subr.mxu0 0.0
  %427 = vmatpush1.msra.mxu0 0.0
  %428 = vmatprep.subr.mxu0 0.0
  %429 = vmatpush1.msra.mxu0 0.0
  %430 = vmatprep.subr.mxu0 0.0
  %431 = vmatpush1.msra.mxu0 0.0
  %432 = vmatprep.subr.mxu0 0.0
  %433 = vmatpush1.msra.mxu0 0.0
  %434 = vmatprep.subr.mxu0 0.0
  %435 = vmatpush1.msra.mxu0 0.0
  %436 = vmatprep.subr.mxu0 0.0
  %437 = vmatpush1.msra.mxu0 0.0
  %438 = vmatprep.subr.mxu0 0.0
  %439 = vmatpush1.msra.mxu0 0.0
  %440 = vmatprep.subr.mxu0 0.0
  %441 = vmatpush1.msra.mxu0 0.0
  %442 = vmatprep.subr.mxu0 0.0
  %443 = vmatpush1.msra.mxu0 0.0
  %444 = vmatprep.subr.mxu0 0.0
  %445 = vmatpush1.msra.mxu0 0.0
  %446 = vmatprep.subr.mxu0 0.0
  %447 = vmatpush1.msra.mxu0 0.0
  %448 = vmatprep.subr.mxu0 0.0
  %449 = vmatpush1.msra.mxu0 0.0
  %450 = vmatprep.subr.mxu0 0.0
  %451 = vmatpush1.msra.mxu0 0.0
  %452 = vmatprep.subr.mxu0 0.0
  %453 = vmatpush1.msra.mxu0 0.0
  %454 = vmatprep.subr.mxu0 0.0
  %455 = vmatpush1.msra.mxu0 0.0
  %456 = vmatprep.subr.mxu0 0.0
  %457 = vmatpush1.msra.mxu0 0.0
  %458 = vmatprep.mubr.f32.mxu0 0.0
  %459 = vmatmul.mubr.f32.gmra.mrb[0].mxu0 %v389
  %v460 = vpop.f32.mrb[0].mxu0
  %v461 = vadd.f32 0.0, %v460
  %v462 = vpop.f32.mrb[0].mxu0
  %463 = vmatprep.mubr.f32.mxu0 0.0
  %464 = vmatmul.mubr.f32.gmra.mrb[0].mxu0 %v392
  %v465 = vpop.f32.mrb[0].mxu0
  %v466 = vadd.f32 0.0, %v465
  %v467 = vpop.f32.mrb[0].mxu0
  %468 = vdwg.mxu0
  %vm469 = vcmask 130048
  %v470 = vsel %vm469, %v461, -inf
  %471 = vmax.xlane.f32.xlu0 %v470
  %v472 = vpop.xlane.xlu0 %471
  %v473 = vsel %vm469, %v466, -inf
  %474 = vmax.xlane.f32.xlu0 %v473
  %v475 = vpop.xlane.xlu0 %474
  %v476 = vsub.f32 %v461, %v472
  %v477 = vsub.f32 %v466, %v475
  %v478 = vmul.f32 %v476, 1.442695
  %v479 = vpow.pop %v478
  %v480 = vmul.f32 %v477, 1.442695
  %v481 = vpow.pop %v480
  %v482 = vsel %vm469, %v479, 0.0
  %483 = vadd.xlane.f32.xlu0 %v482
  %v484 = vpop.xlane.xlu0 %483
  %v485 = vsel %vm469, %v481, 0.0
  %486 = vadd.xlane.f32.xlu0 %v485
  %v487 = vpop.xlane.xlu0 %486
  %v488 = vrcp.pop %v484
  %v489 = vrcp.pop %v487
  %v490 = vmul.f32 %v479, %v488
  %v491 = vmul.f32 %v481, %v489
  %v493 = vsel %vm469, %v351, 0
  %v496 = vsel %vm469, %v352, 0
  %v499 = vsel %vm469, %v353, 0
  %v502 = vsel %vm469, %v354, 0
  %v505 = vsel %vm469, %v490, 0
  %v508 = vsel %vm469, %v491, 0
  %510 = vmatprep.subr.mxu0 0.0
  %511 = vmatpush1.xpose.msra.mxu0 %v505
  %512 = vmatprep.subr.mxu0 0.0
  %513 = vmatpush1.xpose.msra.mxu0 %v508
  %514 = vmatprep.subr.mxu0 0.0
  %515 = vmatpush1.xpose.msra.mxu0 0.0
  %516 = vmatprep.subr.mxu0 0.0
  %517 = vmatpush1.xpose.msra.mxu0 0.0
  %518 = vmatprep.subr.mxu0 0.0
  %519 = vmatpush1.xpose.msra.mxu0 0.0
  %520 = vmatprep.subr.mxu0 0.0
  %521 = vmatpush1.xpose.msra.mxu0 0.0
  %522 = vmatprep.subr.mxu0 0.0
  %523 = vmatpush1.xpose.msra.mxu0 0.0
  %524 = vmatprep.subr.mxu0 0.0
  %525 = vmatpush1.xpose.msra.mxu0 0.0
  %526 = vmatprep.subr.mxu0 0.0
  %527 = vmatpush1.xpose.msra.mxu0 0.0
  %528 = vmatprep.subr.mxu0 0.0
  %529 = vmatpush1.xpose.msra.mxu0 0.0
  %530 = vmatprep.subr.mxu0 0.0
  %531 = vmatpush1.xpose.msra.mxu0 0.0
  %532 = vmatprep.subr.mxu0 0.0
  %533 = vmatpush1.xpose.msra.mxu0 0.0
  %534 = vmatprep.subr.mxu0 0.0
  %535 = vmatpush1.xpose.msra.mxu0 0.0
  %536 = vmatprep.subr.mxu0 0.0
  %537 = vmatpush1.xpose.msra.mxu0 0.0
  %538 = vmatprep.subr.mxu0 0.0
  %539 = vmatpush1.xpose.msra.mxu0 0.0
  %540 = vmatprep.subr.mxu0 0.0
  %541 = vmatpush1.xpose.msra.mxu0 0.0
  %542 = vmatprep.subr.mxu0 0.0
  %543 = vmatpush1.xpose.msra.mxu0 0.0
  %544 = vmatprep.subr.mxu0 0.0
  %545 = vmatpush1.xpose.msra.mxu0 0.0
  %546 = vmatprep.subr.mxu0 0.0
  %547 = vmatpush1.xpose.msra.mxu0 0.0
  %548 = vmatprep.subr.mxu0 0.0
  %549 = vmatpush1.xpose.msra.mxu0 0.0
  %550 = vmatprep.subr.mxu0 0.0
  %551 = vmatpush1.xpose.msra.mxu0 0.0
  %552 = vmatprep.subr.mxu0 0.0
  %553 = vmatpush1.xpose.msra.mxu0 0.0
  %554 = vmatprep.subr.mxu0 0.0
  %555 = vmatpush1.xpose.msra.mxu0 0.0
  %556 = vmatprep.subr.mxu0 0.0
  %557 = vmatpush1.xpose.msra.mxu0 0.0
  %558 = vmatprep.subr.mxu0 0.0
  %559 = vmatpush1.xpose.msra.mxu0 0.0
  %560 = vmatprep.subr.mxu0 0.0
  %561 = vmatpush1.xpose.msra.mxu0 0.0
  %562 = vmatprep.subr.mxu0 0.0
  %563 = vmatpush1.xpose.msra.mxu0 0.0
  %564 = vmatprep.subr.mxu0 0.0
  %565 = vmatpush1.xpose.msra.mxu0 0.0
  %566 = vmatprep.subr.mxu0 0.0
  %567 = vmatpush1.xpose.msra.mxu0 0.0
  %568 = vmatprep.subr.mxu0 0.0
  %569 = vmatpush1.xpose.msra.mxu0 0.0
  %570 = vmatprep.subr.mxu0 0.0
  %571 = vmatpush1.xpose.msra.mxu0 0.0
  %572 = vmatprep.subr.mxu0 0.0
  %573 = vmatpush1.xpose.msra.mxu0 0.0
  %574 = vmatprep.mubr.f32.mxu0 0.0
  %575 = vmatmul.mubr.f32.gmra.mrb[0].mxu0 %v493
  %v576 = vpop.f32.mrb[0].mxu0
  %v577 = vadd.f32 0.0, %v576
  %v578 = vpop.f32.mrb[0].mxu0
  %579 = vmatprep.mubr.f32.mxu0 0.0
  %580 = vmatmul.mubr.f32.gmra.mrb[0].mxu0 %v496
  %v581 = vpop.f32.mrb[0].mxu0
  %v582 = vadd.f32 0.0, %v581
  %v583 = vpop.f32.mrb[0].mxu0
  %584 = vmatprep.mubr.f32.mxu0 0.0
  %585 = vmatmul.mubr.f32.gmra.mrb[0].mxu0 %v499
  %v586 = vpop.f32.mrb[0].mxu0
  %v587 = vadd.f32 0.0, %v586
  %v588 = vpop.f32.mrb[0].mxu0
  %589 = vmatprep.mubr.f32.mxu0 0.0
  %590 = vmatmul.mubr.f32.gmra.mrb[0].mxu0 %v502
  %v591 = vpop.f32.mrb[0].mxu0
  %v592 = vadd.f32 0.0, %v591
  %v593 = vpop.f32.mrb[0].mxu0
  %594 = vdwg.mxu0
  %596 = vset.pattern.permute.xlu0 0
  %597 = vperm.xlu0 %596, %v58
  %v598 = vpop.permute.xlu0 %597
  %601 = vset.pattern.permute.xlu0 0
  %602 = vperm.xlu0 %601, %v59
  %v603 = vpop.permute.xlu0 %602
  %606 = vset.pattern.permute.xlu0 0
  %607 = vperm.xlu0 %606, %v60
  %v608 = vpop.permute.xlu0 %607
  %611 = vset.pattern.permute.xlu0 0
  %612 = vperm.xlu0 %611, %v61
  %v613 = vpop.permute.xlu0 %612
  %v616 = vsel %vm80, %v54, 0
  %v619 = vsel %vm80, %v55, 0
  %v622 = vsel %vm80, %v56, 0
  %v625 = vsel %vm80, %v57, 0
  %627 = vmatprep.subr.mxu0 0.0
  %628 = vmatpush1.msra.mxu0 %v577
  %629 = vmatprep.subr.mxu0 0.0
  %630 = vmatpush1.msra.mxu0 %v582
  %631 = vmatprep.subr.mxu0 0.0
  %632 = vmatpush1.msra.mxu0 %v587
  %633 = vmatprep.subr.mxu0 0.0
  %634 = vmatpush1.msra.mxu0 %v592
  %635 = vmatprep.subr.mxu0 0.0
  %636 = vmatpush1.msra.mxu0 0.0
  %637 = vmatprep.subr.mxu0 0.0
  %638 = vmatpush1.msra.mxu0 0.0
  %639 = vmatprep.subr.mxu0 0.0
  %640 = vmatpush1.msra.mxu0 0.0
  %641 = vmatprep.subr.mxu0 0.0
  %642 = vmatpush1.msra.mxu0 0.0
  %643 = vmatprep.subr.mxu0 0.0
  %644 = vmatpush1.msra.mxu0 0.0
  %645 = vmatprep.subr.mxu0 0.0
  %646 = vmatpush1.msra.mxu0 0.0
  %647 = vmatprep.subr.mxu0 0.0
  %648 = vmatpush1.msra.mxu0 0.0
  %649 = vmatprep.subr.mxu0 0.0
  %650 = vmatpush1.msra.mxu0 0.0
  %651 = vmatprep.subr.mxu0 0.0
  %652 = vmatpush1.msra.mxu0 0.0
  %653 = vmatprep.subr.mxu0 0.0
  %654 = vmatpush1.msra.mxu0 0.0
  %655 = vmatprep.subr.mxu0 0.0
  %656 = vmatpush1.msra.mxu0 0.0
  %657 = vmatprep.subr.mxu0 0.0
  %658 = vmatpush1.msra.mxu0 0.0
  %659 = vmatprep.subr.mxu0 0.0
  %660 = vmatpush1.msra.mxu0 0.0
  %661 = vmatprep.subr.mxu0 0.0
  %662 = vmatpush1.msra.mxu0 0.0
  %663 = vmatprep.subr.mxu0 0.0
  %664 = vmatpush1.msra.mxu0 0.0
  %665 = vmatprep.subr.mxu0 0.0
  %666 = vmatpush1.msra.mxu0 0.0
  %667 = vmatprep.subr.mxu0 0.0
  %668 = vmatpush1.msra.mxu0 0.0
  %669 = vmatprep.subr.mxu0 0.0
  %670 = vmatpush1.msra.mxu0 0.0
  %671 = vmatprep.subr.mxu0 0.0
  %672 = vmatpush1.msra.mxu0 0.0
  %673 = vmatprep.subr.mxu0 0.0
  %674 = vmatpush1.msra.mxu0 0.0
  %675 = vmatprep.subr.mxu0 0.0
  %676 = vmatpush1.msra.mxu0 0.0
  %677 = vmatprep.subr.mxu0 0.0
  %678 = vmatpush1.msra.mxu0 0.0
  %679 = vmatprep.subr.mxu0 0.0
  %680 = vmatpush1.msra.mxu0 0.0
  %681 = vmatprep.subr.mxu0 0.0
  %682 = vmatpush1.msra.mxu0 0.0
  %683 = vmatprep.subr.mxu0 0.0
  %684 = vmatpush1.msra.mxu0 0.0
  %685 = vmatprep.subr.mxu0 0.0
  %686 = vmatpush1.msra.mxu0 0.0
  %687 = vmatprep.subr.mxu0 0.0
  %688 = vmatpush1.msra.mxu0 0.0
  %689 = vmatprep.subr.mxu0 0.0
  %690 = vmatpush1.msra.mxu0 0.0
  %691 = vmatprep.mubr.f32.mxu0 0.0
  %692 = vmatmul.mubr.f32.gmra.mrb[0].mxu0 %v616
  %v693 = vpop.f32.mrb[0].mxu0
  %v694 = vadd.f32 %v598, %v693
  %v695 = vpop.f32.mrb[0].mxu0
  %696 = vmatprep.mubr.f32.mxu0 0.0
  %697 = vmatmul.mubr.f32.gmra.mrb[0].mxu0 %v619
  %v698 = vpop.f32.mrb[0].mxu0
  %v699 = vadd.f32 %v603, %v698
  %v700 = vpop.f32.mrb[0].mxu0
  %701 = vmatprep.mubr.f32.mxu0 0.0
  %702 = vmatmul.mubr.f32.gmra.mrb[0].mxu0 %v622
  %v703 = vpop.f32.mrb[0].mxu0
  %v704 = vadd.f32 %v608, %v703
  %v705 = vpop.f32.mrb[0].mxu0
  %706 = vmatprep.mubr.f32.mxu0 0.0
  %707 = vmatmul.mubr.f32.gmra.mrb[0].mxu0 %v625
  %v708 = vpop.f32.mrb[0].mxu0
  %v709 = vadd.f32 %v613, %v708
  %v710 = vpop.f32.mrb[0].mxu0
  %711 = vdwg.mxu0
  %v712 = vmax.f32 %v694, 0.0
  %v713 = vmax.f32 %v699, 0.0
  %v714 = vmax.f32 %v704, 0.0
  %v715 = vmax.f32 %v709, 0.0
  %v716 = vstv %s62
  %v717 = vmul.f32 %v716, %v712
  %v718 = vmul.f32 %v716, %v713
  %v719 = vmul.f32 %v716, %v714
  %v720 = vmul.f32 %v716, %v715
  %v721 = vadd.f32 %v71, %v717
  %v722 = vadd.f32 %v72, %v718
  %v723 = vadd.f32 %v73, %v719
  %v724 = vadd.f32 %v74, %v720
  %725 = vst.msk [vmem:[%s12] sm:$0xff] %vm469, %v721
  %726 = vst.msk [vmem:[%s12 + $0x8] sm:$0xff] %vm469, %v722
  %727 = vst.msk [vmem:[%s12 + $0x10] sm:$0xff] %vm469, %v723
  %728 = vst.msk [vmem:[%s12 + $0x18] sm:$0xff] %vm469, %v724
  %s729 = scalar_lea.vmem %s0, 32
  %v730 = vld [vmem:[%s729] sm:$0xff]
  %v731 = vld [vmem:[%s729 + $0x8] sm:$0xff]
  %v732 = vld [vmem:[%s729 + $0x10] sm:$0xff]
  %v733 = vld [vmem:[%s729 + $0x18] sm:$0xff]
  %s734 = scalar_lea.vmem %s1, 32
  %v735 = vld [vmem:[%s734] sm:$0xff]
  %v736 = vld [vmem:[%s734 + $0x8] sm:$0xff]
  %v737 = vld [vmem:[%s734 + $0x10] sm:$0xff]
  %v738 = vld [vmem:[%s734 + $0x18] sm:$0xff]
  %s739 = scalar_lea.vmem %s2, 32
  %v740 = vld [vmem:[%s739] sm:$0xff]
  %v741 = vld [vmem:[%s739 + $0x8] sm:$0xff]
  %v742 = vld [vmem:[%s739 + $0x10] sm:$0xff]
  %v743 = vld [vmem:[%s739 + $0x18] sm:$0xff]
  %744 = vmatprep.subr.mxu0 0.0
  %745 = vmatpush1.msra.mxu0 %v730
  %746 = vmatprep.subr.mxu0 0.0
  %747 = vmatpush1.msra.mxu0 %v731
  %748 = vmatprep.subr.mxu0 0.0
  %749 = vmatpush1.msra.mxu0 %v732
  %750 = vmatprep.subr.mxu0 0.0
  %751 = vmatpush1.msra.mxu0 %v733
  %752 = vmatprep.subr.mxu0 0.0
  %753 = vmatpush1.msra.mxu0 0.0
  %754 = vmatprep.subr.mxu0 0.0
  %755 = vmatpush1.msra.mxu0 0.0
  %756 = vmatprep.subr.mxu0 0.0
  %757 = vmatpush1.msra.mxu0 0.0
  %758 = vmatprep.subr.mxu0 0.0
  %759 = vmatpush1.msra.mxu0 0.0
  %760 = vmatprep.subr.mxu0 0.0
  %761 = vmatpush1.msra.mxu0 0.0
  %762 = vmatprep.subr.mxu0 0.0
  %763 = vmatpush1.msra.mxu0 0.0
  %764 = vmatprep.subr.mxu0 0.0
  %765 = vmatpush1.msra.mxu0 0.0
  %766 = vmatprep.subr.mxu0 0.0
  %767 = vmatpush1.msra.mxu0 0.0
  %768 = vmatprep.subr.mxu0 0.0
  %769 = vmatpush1.msra.mxu0 0.0
  %770 = vmatprep.subr.mxu0 0.0
  %771 = vmatpush1.msra.mxu0 0.0
  %772 = vmatprep.subr.mxu0 0.0
  %773 = vmatpush1.msra.mxu0 0.0
  %774 = vmatprep.subr.mxu0 0.0
  %775 = vmatpush1.msra.mxu0 0.0
  %776 = vmatprep.subr.mxu0 0.0
  %777 = vmatpush1.msra.mxu0 0.0
  %778 = vmatprep.subr.mxu0 0.0
  %779 = vmatpush1.msra.mxu0 0.0
  %780 = vmatprep.subr.mxu0 0.0
  %781 = vmatpush1.msra.mxu0 0.0
  %782 = vmatprep.subr.mxu0 0.0
  %783 = vmatpush1.msra.mxu0 0.0
  %784 = vmatprep.subr.mxu0 0.0
  %785 = vmatpush1.msra.mxu0 0.0
  %786 = vmatprep.subr.mxu0 0.0
  %787 = vmatpush1.msra.mxu0 0.0
  %788 = vmatprep.subr.mxu0 0.0
  %789 = vmatpush1.msra.mxu0 0.0
  %790 = vmatprep.subr.mxu0 0.0
  %791 = vmatpush1.msra.mxu0 0.0
  %792 = vmatprep.subr.mxu0 0.0
  %793 = vmatpush1.msra.mxu0 0.0
  %794 = vmatprep.subr.mxu0 0.0
  %795 = vmatpush1.msra.mxu0 0.0
  %796 = vmatprep.subr.mxu0 0.0
  %797 = vmatpush1.msra.mxu0 0.0
  %798 = vmatprep.subr.mxu0 0.0
  %799 = vmatpush1.msra.mxu0 0.0
  %800 = vmatprep.subr.mxu0 0.0
  %801 = vmatpush1.msra.mxu0 0.0
  %802 = vmatprep.subr.mxu0 0.0
  %803 = vmatpush1.msra.mxu0 0.0
  %804 = vmatprep.subr.mxu0 0.0
  %805 = vmatpush1.msra.mxu0 0.0
  %806 = vmatprep.subr.mxu0 0.0
  %807 = vmatpush1.msra.mxu0 0.0
  %808 = vmatprep.mubr.f32.mxu0 0.0
  %809 = vmatmul.mubr.f32.gmra.mrb[0].mxu0 %v82
  %v810 = vpop.f32.mrb[0].mxu0
  %v811 = vadd.f32 %v78, %v810
  %v812 = vpop.f32.mrb[0].mxu0
  %813 = vdwg.mxu0
  %v814 = vmax.f32 %v811, 0.0
  %815 = vmatprep.subr.mxu0 0.0
  %816 = vmatpush1.msra.mxu0 %v735
  %817 = vmatprep.subr.mxu0 0.0
  %818 = vmatpush1.msra.mxu0 %v736
  %819 = vmatprep.subr.mxu0 0.0
  %820 = vmatpush1.msra.mxu0 %v737
  %821 = vmatprep.subr.mxu0 0.0
  %822 = vmatpush1.msra.mxu0 %v738
  %823 = vmatprep.subr.mxu0 0.0
  %824 = vmatpush1.msra.mxu0 0.0
  %825 = vmatprep.subr.mxu0 0.0
  %826 = vmatpush1.msra.mxu0 0.0
  %827 = vmatprep.subr.mxu0 0.0
  %828 = vmatpush1.msra.mxu0 0.0
  %829 = vmatprep.subr.mxu0 0.0
  %830 = vmatpush1.msra.mxu0 0.0
  %831 = vmatprep.subr.mxu0 0.0
  %832 = vmatpush1.msra.mxu0 0.0
  %833 = vmatprep.subr.mxu0 0.0
  %834 = vmatpush1.msra.mxu0 0.0
  %835 = vmatprep.subr.mxu0 0.0
  %836 = vmatpush1.msra.mxu0 0.0
  %837 = vmatprep.subr.mxu0 0.0
  %838 = vmatpush1.msra.mxu0 0.0
  %839 = vmatprep.subr.mxu0 0.0
  %840 = vmatpush1.msra.mxu0 0.0
  %841 = vmatprep.subr.mxu0 0.0
  %842 = vmatpush1.msra.mxu0 0.0
  %843 = vmatprep.subr.mxu0 0.0
  %844 = vmatpush1.msra.mxu0 0.0
  %845 = vmatprep.subr.mxu0 0.0
  %846 = vmatpush1.msra.mxu0 0.0
  %847 = vmatprep.subr.mxu0 0.0
  %848 = vmatpush1.msra.mxu0 0.0
  %849 = vmatprep.subr.mxu0 0.0
  %850 = vmatpush1.msra.mxu0 0.0
  %851 = vmatprep.subr.mxu0 0.0
  %852 = vmatpush1.msra.mxu0 0.0
  %853 = vmatprep.subr.mxu0 0.0
  %854 = vmatpush1.msra.mxu0 0.0
  %855 = vmatprep.subr.mxu0 0.0
  %856 = vmatpush1.msra.mxu0 0.0
  %857 = vmatprep.subr.mxu0 0.0
  %858 = vmatpush1.msra.mxu0 0.0
  %859 = vmatprep.subr.mxu0 0.0
  %860 = vmatpush1.msra.mxu0 0.0
  %861 = vmatprep.subr.mxu0 0.0
  %862 = vmatpush1.msra.mxu0 0.0
  %863 = vmatprep.subr.mxu0 0.0
  %864 = vmatpush1.msra.mxu0 0.0
  %865 = vmatprep.subr.mxu0 0.0
  %866 = vmatpush1.msra.mxu0 0.0
  %867 = vmatprep.subr.mxu0 0.0
  %868 = vmatpush1.msra.mxu0 0.0
  %869 = vmatprep.subr.mxu0 0.0
  %870 = vmatpush1.msra.mxu0 0.0
  %871 = vmatprep.subr.mxu0 0.0
  %872 = vmatpush1.msra.mxu0 0.0
  %873 = vmatprep.subr.mxu0 0.0
  %874 = vmatpush1.msra.mxu0 0.0
  %875 = vmatprep.subr.mxu0 0.0
  %876 = vmatpush1.msra.mxu0 0.0
  %877 = vmatprep.subr.mxu0 0.0
  %878 = vmatpush1.msra.mxu0 0.0
  %879 = vmatprep.mubr.f32.mxu0 0.0
  %880 = vmatmul.mubr.f32.gmra.mrb[0].mxu0 %v161
  %v881 = vpop.f32.mrb[0].mxu0
  %v882 = vadd.f32 %v158, %v881
  %v883 = vpop.f32.mrb[0].mxu0
  %884 = vdwg.mxu0
  %v885 = vmax.f32 %v882, 0.0
  %886 = vmatprep.subr.mxu0 0.0
  %887 = vmatpush1.msra.mxu0 %v740
  %888 = vmatprep.subr.mxu0 0.0
  %889 = vmatpush1.msra.mxu0 %v741
  %890 = vmatprep.subr.mxu0 0.0
  %891 = vmatpush1.msra.mxu0 %v742
  %892 = vmatprep.subr.mxu0 0.0
  %893 = vmatpush1.msra.mxu0 %v743
  %894 = vmatprep.subr.mxu0 0.0
  %895 = vmatpush1.msra.mxu0 0.0
  %896 = vmatprep.subr.mxu0 0.0
  %897 = vmatpush1.msra.mxu0 0.0
  %898 = vmatprep.subr.mxu0 0.0
  %899 = vmatpush1.msra.mxu0 0.0
  %900 = vmatprep.subr.mxu0 0.0
  %901 = vmatpush1.msra.mxu0 0.0
  %902 = vmatprep.subr.mxu0 0.0
  %903 = vmatpush1.msra.mxu0 0.0
  %904 = vmatprep.subr.mxu0 0.0
  %905 = vmatpush1.msra.mxu0 0.0
  %906 = vmatprep.subr.mxu0 0.0
  %907 = vmatpush1.msra.mxu0 0.0
  %908 = vmatprep.subr.mxu0 0.0
  %909 = vmatpush1.msra.mxu0 0.0
  %910 = vmatprep.subr.mxu0 0.0
  %911 = vmatpush1.msra.mxu0 0.0
  %912 = vmatprep.subr.mxu0 0.0
  %913 = vmatpush1.msra.mxu0 0.0
  %914 = vmatprep.subr.mxu0 0.0
  %915 = vmatpush1.msra.mxu0 0.0
  %916 = vmatprep.subr.mxu0 0.0
  %917 = vmatpush1.msra.mxu0 0.0
  %918 = vmatprep.subr.mxu0 0.0
  %919 = vmatpush1.msra.mxu0 0.0
  %920 = vmatprep.subr.mxu0 0.0
  %921 = vmatpush1.msra.mxu0 0.0
  %922 = vmatprep.subr.mxu0 0.0
  %923 = vmatpush1.msra.mxu0 0.0
  %924 = vmatprep.subr.mxu0 0.0
  %925 = vmatpush1.msra.mxu0 0.0
  %926 = vmatprep.subr.mxu0 0.0
  %927 = vmatpush1.msra.mxu0 0.0
  %928 = vmatprep.subr.mxu0 0.0
  %929 = vmatpush1.msra.mxu0 0.0
  %930 = vmatprep.subr.mxu0 0.0
  %931 = vmatpush1.msra.mxu0 0.0
  %932 = vmatprep.subr.mxu0 0.0
  %933 = vmatpush1.msra.mxu0 0.0
  %934 = vmatprep.subr.mxu0 0.0
  %935 = vmatpush1.msra.mxu0 0.0
  %936 = vmatprep.subr.mxu0 0.0
  %937 = vmatpush1.msra.mxu0 0.0
  %938 = vmatprep.subr.mxu0 0.0
  %939 = vmatpush1.msra.mxu0 0.0
  %940 = vmatprep.subr.mxu0 0.0
  %941 = vmatpush1.msra.mxu0 0.0
  %942 = vmatprep.subr.mxu0 0.0
  %943 = vmatpush1.msra.mxu0 0.0
  %944 = vmatprep.subr.mxu0 0.0
  %945 = vmatpush1.msra.mxu0 0.0
  %946 = vmatprep.subr.mxu0 0.0
  %947 = vmatpush1.msra.mxu0 0.0
  %948 = vmatprep.subr.mxu0 0.0
  %949 = vmatpush1.msra.mxu0 0.0
  %950 = vmatprep.mubr.f32.mxu0 0.0
  %951 = vmatmul.mubr.f32.gmra.mrb[0].mxu0 %v255
  %v952 = vpop.f32.mrb[0].mxu0
  %v953 = vadd.f32 %v237, %v952
  %v954 = vpop.f32.mrb[0].mxu0
  %955 = vmatprep.mubr.f32.mxu0 0.0
  %956 = vmatmul.mubr.f32.gmra.mrb[0].mxu0 %v258
  %v957 = vpop.f32.mrb[0].mxu0
  %v958 = vadd.f32 %v242, %v957
  %v959 = vpop.f32.mrb[0].mxu0
  %960 = vmatprep.mubr.f32.mxu0 0.0
  %961 = vmatmul.mubr.f32.gmra.mrb[0].mxu0 %v261
  %v962 = vpop.f32.mrb[0].mxu0
  %v963 = vadd.f32 %v247, %v962
  %v964 = vpop.f32.mrb[0].mxu0
  %965 = vmatprep.mubr.f32.mxu0 0.0
  %966 = vmatmul.mubr.f32.gmra.mrb[0].mxu0 %v264
  %v967 = vpop.f32.mrb[0].mxu0
  %v968 = vadd.f32 %v252, %v967
  %v969 = vpop.f32.mrb[0].mxu0
  %970 = vdwg.mxu0
  %v971 = vmax.f32 %v953, 0.0
  %v972 = vmax.f32 %v958, 0.0
  %v973 = vmax.f32 %v963, 0.0
  %v974 = vmax.f32 %v968, 0.0
  %975 = vxpose.xlu0.b32.start [1/16] %v814, 128
  %976 = vxpose.xlu0.b32.cont [2/16] 0.0, 128
  %977 = vxpose.xlu0.b32.cont [3/16] 0.0, 128
  %978 = vxpose.xlu0.b32.cont [4/16] 0.0, 128
  %979 = vxpose.xlu0.b32.cont [5/16] 0.0, 128
  %980 = vxpose.xlu0.b32.cont [6/16] 0.0, 128
  %981 = vxpose.xlu0.b32.cont [7/16] 0.0, 128
  %982 = vxpose.xlu0.b32.cont [8/16] 0.0, 128
  %983 = vxpose.xlu0.b32.cont [9/16] 0.0, 128
  %984 = vxpose.xlu0.b32.cont [10/16] 0.0, 128
  %985 = vxpose.xlu0.b32.cont [11/16] 0.0, 128
  %986 = vxpose.xlu0.b32.cont [12/16] 0.0, 128
  %987 = vxpose.xlu0.b32.cont [13/16] 0.0, 128
  %988 = vxpose.xlu0.b32.cont [14/16] 0.0, 128
  %989 = vxpose.xlu0.b32.cont [15/16] 0.0, 128
  %990 = vxpose.xlu0.b32.end [16/16] 0.0, 128
  %v991 = vpop.trf.xlu0
  %v992 = vpop.trf.xlu0
  %v993 = vpop.trf.xlu0
  %v994 = vpop.trf.xlu0
  %v995 = vpop.trf.xlu0
  %v996 = vpop.trf.xlu0
  %v997 = vpop.trf.xlu0
  %v998 = vpop.trf.xlu0
  %v999 = vpop.trf.xlu0
  %v1000 = vpop.trf.xlu0
  %v1001 = vpop.trf.xlu0
  %v1002 = vpop.trf.xlu0
  %v1003 = vpop.trf.xlu0
  %v1004 = vpop.trf.xlu0
  %v1005 = vpop.trf.xlu0
  %v1006 = vpop.trf.xlu0
  %v1008 = vsel %vm387, %v991, 0
  %v1011 = vsel %vm387, %v992, 0
  %1013 = vmatprep.subr.mxu0 0.0
  %1014 = vmatpush1.msra.mxu0 %v885
  %1015 = vmatprep.subr.mxu0 0.0
  %1016 = vmatpush1.msra.mxu0 0.0
  %1017 = vmatprep.subr.mxu0 0.0
  %1018 = vmatpush1.msra.mxu0 0.0
  %1019 = vmatprep.subr.mxu0 0.0
  %1020 = vmatpush1.msra.mxu0 0.0
  %1021 = vmatprep.subr.mxu0 0.0
  %1022 = vmatpush1.msra.mxu0 0.0
  %1023 = vmatprep.subr.mxu0 0.0
  %1024 = vmatpush1.msra.mxu0 0.0
  %1025 = vmatprep.subr.mxu0 0.0
  %1026 = vmatpush1.msra.mxu0 0.0
  %1027 = vmatprep.subr.mxu0 0.0
  %1028 = vmatpush1.msra.mxu0 0.0
  %1029 = vmatprep.subr.mxu0 0.0
  %1030 = vmatpush1.msra.mxu0 0.0
  %1031 = vmatprep.subr.mxu0 0.0
  %1032 = vmatpush1.msra.mxu0 0.0
  %1033 = vmatprep.subr.mxu0 0.0
  %1034 = vmatpush1.msra.mxu0 0.0
  %1035 = vmatprep.subr.mxu0 0.0
  %1036 = vmatpush1.msra.mxu0 0.0
  %1037 = vmatprep.subr.mxu0 0.0
  %1038 = vmatpush1.msra.mxu0 0.0
  %1039 = vmatprep.subr.mxu0 0.0
  %1040 = vmatpush1.msra.mxu0 0.0
  %1041 = vmatprep.subr.mxu0 0.0
  %1042 = vmatpush1.msra.mxu0 0.0
  %1043 = vmatprep.subr.mxu0 0.0
  %1044 = vmatpush1.msra.mxu0 0.0
  %1045 = vmatprep.subr.mxu0 0.0
  %1046 = vmatpush1.msra.mxu0 0.0
  %1047 = vmatprep.subr.mxu0 0.0
  %1048 = vmatpush1.msra.mxu0 0.0
  %1049 = vmatprep.subr.mxu0 0.0
  %1050 = vmatpush1.msra.mxu0 0.0
  %1051 = vmatprep.subr.mxu0 0.0
  %1052 = vmatpush1.msra.mxu0 0.0
  %1053 = vmatprep.subr.mxu0 0.0
  %1054 = vmatpush1.msra.mxu0 0.0
  %1055 = vmatprep.subr.mxu0 0.0
  %1056 = vmatpush1.msra.mxu0 0.0
  %1057 = vmatprep.subr.mxu0 0.0
  %1058 = vmatpush1.msra.mxu0 0.0
  %1059 = vmatprep.subr.mxu0 0.0
  %1060 = vmatpush1.msra.mxu0 0.0
  %1061 = vmatprep.subr.mxu0 0.0
  %1062 = vmatpush1.msra.mxu0 0.0
  %1063 = vmatprep.subr.mxu0 0.0
  %1064 = vmatpush1.msra.mxu0 0.0
  %1065 = vmatprep.subr.mxu0 0.0
  %1066 = vmatpush1.msra.mxu0 0.0
  %1067 = vmatprep.subr.mxu0 0.0
  %1068 = vmatpush1.msra.mxu0 0.0
  %1069 = vmatprep.subr.mxu0 0.0
  %1070 = vmatpush1.msra.mxu0 0.0
  %1071 = vmatprep.subr.mxu0 0.0
  %1072 = vmatpush1.msra.mxu0 0.0
  %1073 = vmatprep.subr.mxu0 0.0
  %1074 = vmatpush1.msra.mxu0 0.0
  %1075 = vmatprep.subr.mxu0 0.0
  %1076 = vmatpush1.msra.mxu0 0.0
  %1077 = vmatprep.mubr.f32.mxu0 0.0
  %1078 = vmatmul.mubr.f32.gmra.mrb[0].mxu0 %v1008
  %v1079 = vpop.f32.mrb[0].mxu0
  %v1080 = vadd.f32 0.0, %v1079
  %v1081 = vpop.f32.mrb[0].mxu0
  %1082 = vmatprep.mubr.f32.mxu0 0.0
  %1083 = vmatmul.mubr.f32.gmra.mrb[0].mxu0 %v1011
  %v1084 = vpop.f32.mrb[0].mxu0
  %v1085 = vadd.f32 0.0, %v1084
  %v1086 = vpop.f32.mrb[0].mxu0
  %1087 = vdwg.mxu0
  %v1088 = vsel %vm469, %v1080, -inf
  %1089 = vmax.xlane.f32.xlu0 %v1088
  %v1090 = vpop.xlane.xlu0 %1089
  %v1091 = vsel %vm469, %v1085, -inf
  %1092 = vmax.xlane.f32.xlu0 %v1091
  %v1093 = vpop.xlane.xlu0 %1092
  %v1094 = vsub.f32 %v1080, %v1090
  %v1095 = vsub.f32 %v1085, %v1093
  %v1096 = vmul.f32 %v1094, 1.442695
  %v1097 = vpow.pop %v1096
  %v1098 = vmul.f32 %v1095, 1.442695
  %v1099 = vpow.pop %v1098
  %v1100 = vsel %vm469, %v1097, 0.0
  %1101 = vadd.xlane.f32.xlu0 %v1100
  %v1102 = vpop.xlane.xlu0 %1101
  %v1103 = vsel %vm469, %v1099, 0.0
  %1104 = vadd.xlane.f32.xlu0 %v1103
  %v1105 = vpop.xlane.xlu0 %1104
  %v1106 = vrcp.pop %v1102
  %v1107 = vrcp.pop %v1105
  %v1108 = vmul.f32 %v1097, %v1106
  %v1109 = vmul.f32 %v1099, %v1107
  %v1111 = vsel %vm469, %v971, 0
  %v1114 = vsel %vm469, %v972, 0
  %v1117 = vsel %vm469, %v973, 0
  %v1120 = vsel %vm469, %v974, 0
  %v1123 = vsel %vm469, %v1108, 0
  %v1126 = vsel %vm469, %v1109, 0
  %1128 = vmatprep.subr.mxu0 0.0
  %1129 = vmatpush1.xpose.msra.mxu0 %v1123
  %1130 = vmatprep.subr.mxu0 0.0
  %1131 = vmatpush1.xpose.msra.mxu0 %v1126
  %1132 = vmatprep.subr.mxu0 0.0
  %1133 = vmatpush1.xpose.msra.mxu0 0.0
  %1134 = vmatprep.subr.mxu0 0.0
  %1135 = vmatpush1.xpose.msra.mxu0 0.0
  %1136 = vmatprep.subr.mxu0 0.0
  %1137 = vmatpush1.xpose.msra.mxu0 0.0
  %1138 = vmatprep.subr.mxu0 0.0
  %1139 = vmatpush1.xpose.msra.mxu0 0.0
  %1140 = vmatprep.subr.mxu0 0.0
  %1141 = vmatpush1.xpose.msra.mxu0 0.0
  %1142 = vmatprep.subr.mxu0 0.0
  %1143 = vmatpush1.xpose.msra.mxu0 0.0
  %1144 = vmatprep.subr.mxu0 0.0
  %1145 = vmatpush1.xpose.msra.mxu0 0.0
  %1146 = vmatprep.subr.mxu0 0.0
  %1147 = vmatpush1.xpose.msra.mxu0 0.0
  %1148 = vmatprep.subr.mxu0 0.0
  %1149 = vmatpush1.xpose.msra.mxu0 0.0
  %1150 = vmatprep.subr.mxu0 0.0
  %1151 = vmatpush1.xpose.msra.mxu0 0.0
  %1152 = vmatprep.subr.mxu0 0.0
  %1153 = vmatpush1.xpose.msra.mxu0 0.0
  %1154 = vmatprep.subr.mxu0 0.0
  %1155 = vmatpush1.xpose.msra.mxu0 0.0
  %1156 = vmatprep.subr.mxu0 0.0
  %1157 = vmatpush1.xpose.msra.mxu0 0.0
  %1158 = vmatprep.subr.mxu0 0.0
  %1159 = vmatpush1.xpose.msra.mxu0 0.0
  %1160 = vmatprep.subr.mxu0 0.0
  %1161 = vmatpush1.xpose.msra.mxu0 0.0
  %1162 = vmatprep.subr.mxu0 0.0
  %1163 = vmatpush1.xpose.msra.mxu0 0.0
  %1164 = vmatprep.subr.mxu0 0.0
  %1165 = vmatpush1.xpose.msra.mxu0 0.0
  %1166 = vmatprep.subr.mxu0 0.0
  %1167 = vmatpush1.xpose.msra.mxu0 0.0
  %1168 = vmatprep.subr.mxu0 0.0
  %1169 = vmatpush1.xpose.msra.mxu0 0.0
  %1170 = vmatprep.subr.mxu0 0.0
  %1171 = vmatpush1.xpose.msra.mxu0 0.0
  %1172 = vmatprep.subr.mxu0 0.0
  %1173 = vmatpush1.xpose.msra.mxu0 0.0
  %1174 = vmatprep.subr.mxu0 0.0
  %1175 = vmatpush1.xpose.msra.mxu0 0.0
  %1176 = vmatprep.subr.mxu0 0.0
  %1177 = vmatpush1.xpose.msra.mxu0 0.0
  %1178 = vmatprep.subr.mxu0 0.0
  %1179 = vmatpush1.xpose.msra.mxu0 0.0
  %1180 = vmatprep.subr.mxu0 0.0
  %1181 = vmatpush1.xpose.msra.mxu0 0.0
  %1182 = vmatprep.subr.mxu0 0.0
  %1183 = vmatpush1.xpose.msra.mxu0 0.0
  %1184 = vmatprep.subr.mxu0 0.0
  %1185 = vmatpush1.xpose.msra.mxu0 0.0
  %1186 = vmatprep.subr.mxu0 0.0
  %1187 = vmatpush1.xpose.msra.mxu0 0.0
  %1188 = vmatprep.subr.mxu0 0.0
  %1189 = vmatpush1.xpose.msra.mxu0 0.0
  %1190 = vmatprep.subr.mxu0 0.0
  %1191 = vmatpush1.xpose.msra.mxu0 0.0
  %1192 = vmatprep.mubr.f32.mxu0 0.0
  %1193 = vmatmul.mubr.f32.gmra.mrb[0].mxu0 %v1111
  %v1194 = vpop.f32.mrb[0].mxu0
  %v1195 = vadd.f32 0.0, %v1194
  %v1196 = vpop.f32.mrb[0].mxu0
  %1197 = vmatprep.mubr.f32.mxu0 0.0
  %1198 = vmatmul.mubr.f32.gmra.mrb[0].mxu0 %v1114
  %v1199 = vpop.f32.mrb[0].mxu0
  %v1200 = vadd.f32 0.0, %v1199
  %v1201 = vpop.f32.mrb[0].mxu0
  %1202 = vmatprep.mubr.f32.mxu0 0.0
  %1203 = vmatmul.mubr.f32.gmra.mrb[0].mxu0 %v1117
  %v1204 = vpop.f32.mrb[0].mxu0
  %v1205 = vadd.f32 0.0, %v1204
  %v1206 = vpop.f32.mrb[0].mxu0
  %1207 = vmatprep.mubr.f32.mxu0 0.0
  %1208 = vmatmul.mubr.f32.gmra.mrb[0].mxu0 %v1120
  %v1209 = vpop.f32.mrb[0].mxu0
  %v1210 = vadd.f32 0.0, %v1209
  %v1211 = vpop.f32.mrb[0].mxu0
  %1212 = vdwg.mxu0
  %1213 = vmatprep.subr.mxu0 0.0
  %1214 = vmatpush1.msra.mxu0 %v1195
  %1215 = vmatprep.subr.mxu0 0.0
  %1216 = vmatpush1.msra.mxu0 %v1200
  %1217 = vmatprep.subr.mxu0 0.0
  %1218 = vmatpush1.msra.mxu0 %v1205
  %1219 = vmatprep.subr.mxu0 0.0
  %1220 = vmatpush1.msra.mxu0 %v1210
  %1221 = vmatprep.subr.mxu0 0.0
  %1222 = vmatpush1.msra.mxu0 0.0
  %1223 = vmatprep.subr.mxu0 0.0
  %1224 = vmatpush1.msra.mxu0 0.0
  %1225 = vmatprep.subr.mxu0 0.0
  %1226 = vmatpush1.msra.mxu0 0.0
  %1227 = vmatprep.subr.mxu0 0.0
  %1228 = vmatpush1.msra.mxu0 0.0
  %1229 = vmatprep.subr.mxu0 0.0
  %1230 = vmatpush1.msra.mxu0 0.0
  %1231 = vmatprep.subr.mxu0 0.0
  %1232 = vmatpush1.msra.mxu0 0.0
  %1233 = vmatprep.subr.mxu0 0.0
  %1234 = vmatpush1.msra.mxu0 0.0
  %1235 = vmatprep.subr.mxu0 0.0
  %1236 = vmatpush1.msra.mxu0 0.0
  %1237 = vmatprep.subr.mxu0 0.0
  %1238 = vmatpush1.msra.mxu0 0.0
  %1239 = vmatprep.subr.mxu0 0.0
  %1240 = vmatpush1.msra.mxu0 0.0
  %1241 = vmatprep.subr.mxu0 0.0
  %1242 = vmatpush1.msra.mxu0 0.0
  %1243 = vmatprep.subr.mxu0 0.0
  %1244 = vmatpush1.msra.mxu0 0.0
  %1245 = vmatprep.subr.mxu0 0.0
  %1246 = vmatpush1.msra.mxu0 0.0
  %1247 = vmatprep.subr.mxu0 0.0
  %1248 = vmatpush1.msra.mxu0 0.0
  %1249 = vmatprep.subr.mxu0 0.0
  %1250 = vmatpush1.msra.mxu0 0.0
  %1251 = vmatprep.subr.mxu0 0.0
  %1252 = vmatpush1.msra.mxu0 0.0
  %1253 = vmatprep.subr.mxu0 0.0
  %1254 = vmatpush1.msra.mxu0 0.0
  %1255 = vmatprep.subr.mxu0 0.0
  %1256 = vmatpush1.msra.mxu0 0.0
  %1257 = vmatprep.subr.mxu0 0.0
  %1258 = vmatpush1.msra.mxu0 0.0
  %1259 = vmatprep.subr.mxu0 0.0
  %1260 = vmatpush1.msra.mxu0 0.0
  %1261 = vmatprep.subr.mxu0 0.0
  %1262 = vmatpush1.msra.mxu0 0.0
  %1263 = vmatprep.subr.mxu0 0.0
  %1264 = vmatpush1.msra.mxu0 0.0
  %1265 = vmatprep.subr.mxu0 0.0
  %1266 = vmatpush1.msra.mxu0 0.0
  %1267 = vmatprep.subr.mxu0 0.0
  %1268 = vmatpush1.msra.mxu0 0.0
  %1269 = vmatprep.subr.mxu0 0.0
  %1270 = vmatpush1.msra.mxu0 0.0
  %1271 = vmatprep.subr.mxu0 0.0
  %1272 = vmatpush1.msra.mxu0 0.0
  %1273 = vmatprep.subr.mxu0 0.0
  %1274 = vmatpush1.msra.mxu0 0.0
  %1275 = vmatprep.subr.mxu0 0.0
  %1276 = vmatpush1.msra.mxu0 0.0
  %1277 = vmatprep.mubr.f32.mxu0 0.0
  %1278 = vmatmul.mubr.f32.gmra.mrb[0].mxu0 %v616
  %v1279 = vpop.f32.mrb[0].mxu0
  %v1280 = vadd.f32 %v598, %v1279
  %v1281 = vpop.f32.mrb[0].mxu0
  %1282 = vmatprep.mubr.f32.mxu0 0.0
  %1283 = vmatmul.mubr.f32.gmra.mrb[0].mxu0 %v619
  %v1284 = vpop.f32.mrb[0].mxu0
  %v1285 = vadd.f32 %v603, %v1284
  %v1286 = vpop.f32.mrb[0].mxu0
  %1287 = vmatprep.mubr.f32.mxu0 0.0
  %1288 = vmatmul.mubr.f32.gmra.mrb[0].mxu0 %v622
  %v1289 = vpop.f32.mrb[0].mxu0
  %v1290 = vadd.f32 %v608, %v1289
  %v1291 = vpop.f32.mrb[0].mxu0
  %1292 = vmatprep.mubr.f32.mxu0 0.0
  %1293 = vmatmul.mubr.f32.gmra.mrb[0].mxu0 %v625
  %v1294 = vpop.f32.mrb[0].mxu0
  %v1295 = vadd.f32 %v613, %v1294
  %v1296 = vpop.f32.mrb[0].mxu0
  %1297 = vdwg.mxu0
  %v1298 = vmax.f32 %v1280, 0.0
  %v1299 = vmax.f32 %v1285, 0.0
  %v1300 = vmax.f32 %v1290, 0.0
  %v1301 = vmax.f32 %v1295, 0.0
  %v1302 = vmul.f32 %v716, %v1298
  %v1303 = vmul.f32 %v716, %v1299
  %v1304 = vmul.f32 %v716, %v1300
  %v1305 = vmul.f32 %v716, %v1301
  %v1306 = vadd.f32 %v740, %v1302
  %v1307 = vadd.f32 %v741, %v1303
  %v1308 = vadd.f32 %v742, %v1304
  %v1309 = vadd.f32 %v743, %v1305
  %s1310 = scalar_lea.vmem %s12, 32
  %1311 = vst.msk [vmem:[%s1310] sm:$0xff] %vm469, %v1306
  %1312 = vst.msk [vmem:[%s1310 + $0x8] sm:$0xff] %vm469, %v1307
  %1313 = vst.msk [vmem:[%s1310 + $0x10] sm:$0xff] %vm469, %v1308
  %1314 = vst.msk [vmem:[%s1310 + $0x18] sm:$0xff] %vm469, %v1309
  // Predicated region
  $region50: #{tpu_custom_call.1} parent=0 // pred_check
    _
  $region51: #{tpu_custom_call.1} parent=0 // pred_check_branch
    %1316 = sbr.rel (0) target = $region53
  $region52: #{tpu_custom_call.1} parent=0 // pred_region
    _
  $region53: #{tpu_custom_call.1} parent=0 // pred_fallthru
    _
  // Predicated region
  $region54: #{tpu_custom_call.1} parent=0 // pred_check
    _
  $region55: #{tpu_custom_call.1} parent=0 // pred_check_branch
    %1318 = sbr.rel (0) target = $region57
  $region56: #{tpu_custom_call.1} parent=0 // pred_region
    _
  $region57: #{tpu_custom_call.1} parent=0 // pred_fallthru
    _

</llo_original>
